<compile_context>
chip_gen: v6e
topology: v6e:2x2x1
jax: 0.10.0
libtpu: 0.0.40
codegen_flags: <defaults>
</compile_context>

<pallas_src>
import functools

import jax
import jax.numpy as jnp
from jax import lax
from jax.experimental import pallas as pl
from jax.experimental.pallas import tpu as pltpu


def _round_up(n, m):
    return ((n + m - 1) // m) * m


def fc_nn_kernel(x_ref, w1_ref, b1_ref, w2_ref, b2_ref, w3_ref, b3_ref,
                 g_ref, beta_ref, o_ref, *, bf16_vpu):
    x = x_ref[...]                                         # (TM, 2) f32

    # Layer 0: Linear(2 -> 128) + ReLU as VPU broadcast MACs (K=2 would waste
    # the MXU).  On bf16-VPU chips the ReLU runs on bf16 vregs (bit-identical:
    # ReLU commutes with the monotone cast and cast(0) == 0).
    h0 = (x[:, 0:1] * w1_ref[0:1, :]
          + x[:, 1:2] * w1_ref[1:2, :]
          + b1_ref[...])                                   # (TM, 128) f32
    if bf16_vpu:
        h = jnp.maximum(h0.astype(jnp.bfloat16), 0)        # (TM, 128) bf16
    else:
        h = jnp.maximum(h0, 0.0).astype(jnp.bfloat16)

    # Layer 1: Linear(128 -> 128) on the MXU (bf16 operands, f32 accumulate),
    # fused with bias-add + ReLU + the layer-2 w3 multiply so no extra
    # full-width (TM, 128) f32 intermediates are materialized between layers.
    z = jnp.dot(h, w2_ref[...], preferred_element_type=jnp.float32)
    a = jnp.maximum(z + b2_ref[...], 0.0)                  # (TM, 128) f32

    # Layer 2: Linear(128 -> 1) as elementwise multiply + cross-lane (XLU)
    # reduce, producing a lane-dense (TM//128, 128) block mapping row-major to
    # batch rows (avoids masked (TM, 1) stores).
    gdim, ldim = o_ref.shape                               # (TM//128, 128)
    if bf16_vpu:
        hw = a.astype(jnp.bfloat16) * w3_ref[...].astype(jnp.bfloat16)
        y = jnp.sum(hw.reshape(gdim, ldim, hw.shape[-1]), axis=-1,
                    dtype=jnp.float32) + b3_ref[0]
    else:
        hw = a * w3_ref[...]
        y = jnp.sum(hw.reshape(gdim, ldim, hw.shape[-1]), axis=-1) + b3_ref[0]

    # LayerNorm over the last feature dim (size 1, eps=1e-6): each output
    # scalar is its own normalization group -> mu == y, var == 0.  Kept
    # literal (elementwise) to match the torch module exactly.
    mu = y
    diff = y - mu
    var = diff * diff
    y_hat = diff * lax.rsqrt(var + 1e-6)
    o_ref[...] = (g_ref[0] * y_hat + beta_ref[0]).astype(o_ref.dtype)


def fc_nn_forward(x, params):
    """x: (B, 2) float32.  Returns (B, 1) float32, matching the torch module."""
    x = x.astype(jnp.float32)
    B = x.shape[0]
    H = params["w2"].shape[0]                              # hidden size (128)

    kind = jax.devices()[0].device_kind.lower()
    is_v7 = "v7" in kind
    bf16_vpu = ("v6" in kind) or is_v7                     # v5e/v4 VPU: no bf16

    # ---- batch tiling ---------------------------------------------------
    # Big tiles amortize the ~0.35 us (~600 cycle) per-grid-step overhead; cap
    # by VMEM (v7x has only 64 MiB per TensorCore) and keep >= 2 grid steps
    # whenever there is more than one 128-row tile of work so v7x's two
    # TensorCores can split the "parallel" batch axis (harmless on 1-TC chips).
    tm_cap = 4096 if is_v7 else 8192
    B0 = _round_up(max(B, 1), 128)
    half = _round_up(-(-B0 // 2), 128)                     # ceil(B0/2) -> x128
    TM = max(128, min(tm_cap, half))
    B_pad = _round_up(B0, TM)
    grid = (B_pad // TM,)
    if B_pad != B:
        x = jnp.pad(x, ((0, B_pad - B), (0, 0)))

    # VMEM budget: the x block is lane-padded to 128 lanes (TM*512 B, double
    # buffered) plus a handful of (TM, 128) f32/bf16 intermediates.  Raise the
    # scoped-VMEM limit (v5e defaults to ~16 MiB) with headroom, staying well
    # under the per-core physical capacity.
    full_tile_bytes = TM * 128 * 4
    phys_vmem = (64 << 20) if is_v7 else (128 << 20)
    vmem_limit = int(min(phys_vmem * 0.6,
                         max(32 << 20, 12 * full_tile_bytes)))

    w1 = params["w1"].astype(jnp.float32)                  # (2, H)
    b1 = params["b1"].reshape(1, H).astype(jnp.float32)
    w2 = params["w2"].astype(jnp.bfloat16)                 # (H, H) bf16 (MXU)
    b2 = params["b2"].reshape(1, H).astype(jnp.float32)
    w3 = params["w3"].reshape(1, H).astype(jnp.float32)    # (H, 1) -> (1, H)
    b3 = params["b3"].reshape(-1).astype(jnp.float32)      # (1,)
    gamma = params["ln_gamma"].reshape(-1).astype(jnp.float32)
    beta = params["ln_beta"].reshape(-1).astype(jnp.float32)

    smem = pl.BlockSpec(memory_space=pltpu.MemorySpace.SMEM)
    kernel = functools.partial(fc_nn_kernel, bf16_vpu=bf16_vpu)

    def build(single_buffer_weights):
        if single_buffer_weights:
            # Constant block index -> never re-DMAed; single buffering avoids
            # wasting VMEM on a pointless second pipeline buffer.
            resident = lambda shape: pl.BlockSpec(
                shape, lambda i: (0, 0), pipeline_mode=pl.Buffered(1))
        else:
            resident = lambda shape: pl.BlockSpec(shape, lambda i: (0, 0))
        return pl.pallas_call(
            kernel,
            out_shape=jax.ShapeDtypeStruct((B_pad // 128, 128), jnp.float32),
            grid=grid,
            in_specs=[
                pl.BlockSpec((TM, 2), lambda i: (i, 0)),   # x: tiled over batch
                resident((2, H)),                          # w1
                resident((1, H)),                          # b1
                resident((H, H)),                          # w2 (bf16)
                resident((1, H)),                          # b2
                resident((1, H)),                          # w3 row
                smem,                                      # b3 scalar
                smem,                                      # ln gamma scalar
                smem,                                      # ln beta scalar
            ],
            out_specs=pl.BlockSpec((TM // 128, 128), lambda i: (i, 0)),
            compiler_params=pltpu.CompilerParams(
                dimension_semantics=("parallel",),
                vmem_limit_bytes=vmem_limit),
        )

    args = (x, w1, b1, w2, b2, w3, b3, gamma, beta)
    try:
        out2d = build(True)(*args)
    except Exception:
        # Fallback for JAX versions without pipeline_mode / Buffered(1).
        out2d = build(False)(*args)

    return out2d.reshape(B_pad, 1)[:B]


def init_params(key, sizes=(2, 128, 128, 1)):
    """nn.Linear-style init (uniform +-1/sqrt(fan_in)); LayerNorm weight=1, bias=0.
    Weights stored (in_features, out_features) so kernels compute x @ W + b."""
    k1, k2, k3, k4, k5, k6 = jax.random.split(key, 6)

    def lin(kw, kb, fin, fout):
        bound = 1.0 / float(fin) ** 0.5
        w = jax.random.uniform(kw, (fin, fout), jnp.float32, -bound, bound)
        b = jax.random.uniform(kb, (fout,), jnp.float32, -bound, bound)
        return w, b

    w1, b1 = lin(k1, k2, sizes[0], sizes[1])
    w2, b2 = lin(k3, k4, sizes[1], sizes[2])
    w3, b3 = lin(k5, k6, sizes[2], sizes[3])
    return {
        "w1": w1, "b1": b1,
        "w2": w2, "b2": b2,
        "w3": w3, "b3": b3,
        "ln_gamma": jnp.ones((sizes[3],), jnp.float32),
        "ln_beta": jnp.zeros((sizes[3],), jnp.float32),
    }


def fc_nn_reference(x, p):
    """Pure-JAX f32 reference matching torch semantics."""
    h = jnp.maximum(x @ p["w1"] + p["b1"][None, :], 0.0)
    h = jnp.maximum(h @ p["w2"] + p["b2"][None, :], 0.0)
    y = h @ p["w3"] + p["b3"][None, :]
    mu = jnp.mean(y, axis=-1, keepdims=True)
    var = jnp.mean((y - mu) ** 2, axis=-1, keepdims=True)
    return (p["ln_gamma"][None, :] * ((y - mu) * lax.rsqrt(var + 1e-6))
            + p["ln_beta"][None, :])


if __name__ == "__main__":
    key = jax.random.PRNGKey(0)
    kx, kp = jax.random.split(key)
    params = init_params(kp)

    # Small case (single grid step; batch padded to one 128-row tile).
    B = 8
    x = jax.random.normal(kx, (B, 2), jnp.float32)
    out = jax.block_until_ready(fc_nn_forward(x, params))
    ref = fc_nn_reference(x, params)
    assert out.shape == (B, 1)
    # NB: LayerNorm(1) makes both kernel and reference output exactly ln_beta,
    # so this check validates plumbing/shapes rather than bf16 matmul accuracy.
    assert jnp.allclose(out, ref, atol=1e-4), "mismatch vs. reference (B=8)"

    # Multi-step case: exercises batch tiling, >= 2 grid steps, tail padding.
    B2 = 300
    x2 = jax.random.normal(kx, (B2, 2), jnp.float32)
    out2 = jax.block_until_ready(fc_nn_forward(x2, params))
    ref2 = fc_nn_reference(x2, params)
    assert out2.shape == (B2, 1)
    assert jnp.allclose(out2, ref2, atol=1e-4), "mismatch vs. reference (B=300)"

    print("KERNEL_OK")
</pallas_src>

<mosaic_0001>
module attributes {stable_mosaic.version = 11 : i64} {
  func.func @fc_nn_kernel(%arg0: i32, %arg1: memref<128x2xf32, #tpu.memory_space<vmem>>, %arg2: memref<2x128xf32, #tpu.memory_space<vmem>>, %arg3: memref<1x128xf32, #tpu.memory_space<vmem>>, %arg4: memref<128x128xbf16, #tpu.memory_space<vmem>>, %arg5: memref<1x128xf32, #tpu.memory_space<vmem>>, %arg6: memref<1x128xf32, #tpu.memory_space<vmem>>, %arg7: memref<1xf32, #tpu.memory_space<smem>>, %arg8: memref<1xf32, #tpu.memory_space<smem>>, %arg9: memref<1xf32, #tpu.memory_space<smem>>, %arg10: memref<1x128xf32, #tpu.memory_space<vmem>>) attributes {dimension_semantics = [#tpu.dimension_semantics<parallel>], iteration_bounds = array<i64: 1>, scalar_prefetch = 0 : i64, scratch_operands = 0 : i64, tpu.core_type = #tpu.core_type<tc>, window_params = [{transform_indices = @transform_0, window_bounds = array<i64: 128, 2>}, {pipeline_mode = #tpu.pipeline_mode<synchronous>, transform_indices = @transform_1, window_bounds = array<i64: 2, 128>}, {pipeline_mode = #tpu.pipeline_mode<synchronous>, transform_indices = @transform_2, window_bounds = array<i64: 1, 128>}, {pipeline_mode = #tpu.pipeline_mode<synchronous>, transform_indices = @transform_3, window_bounds = array<i64: 128, 128>}, {pipeline_mode = #tpu.pipeline_mode<synchronous>, transform_indices = @transform_4, window_bounds = array<i64: 1, 128>}, {pipeline_mode = #tpu.pipeline_mode<synchronous>, transform_indices = @transform_5, window_bounds = array<i64: 1, 128>}, {transform_indices = @transform_6, window_bounds = array<i64: 1>}, {transform_indices = @transform_7, window_bounds = array<i64: 1>}, {transform_indices = @transform_8, window_bounds = array<i64: 1>}, {transform_indices = @transform_9, window_bounds = array<i64: 1, 128>}]} {
    %c0 = arith.constant 0 : index
    %c0_0 = arith.constant 0 : index
    %0 = vector.load %arg1[%c0, %c0_0] : memref<128x2xf32, #tpu.memory_space<vmem>>, vector<128x2xf32>
    %1 = vector.extract_strided_slice %0 {offsets = [0, 0], sizes = [128, 1], strides = [1, 1]} : vector<128x2xf32> to vector<128x1xf32>
    %c0_1 = arith.constant 0 : index
    %c0_2 = arith.constant 0 : index
    %2 = vector.load %arg2[%c0_1, %c0_2] : memref<2x128xf32, #tpu.memory_space<vmem>>, vector<1x128xf32>
    %3 = vector.broadcast %1 : vector<128x1xf32> to vector<128x128xf32>
    %4 = vector.broadcast %2 : vector<1x128xf32> to vector<128x128xf32>
    %5 = arith.mulf %3, %4 : vector<128x128xf32>
    %6 = vector.extract_strided_slice %0 {offsets = [0, 1], sizes = [128, 1], strides = [1, 1]} : vector<128x2xf32> to vector<128x1xf32>
    %c1 = arith.constant 1 : index
    %c0_3 = arith.constant 0 : index
    %7 = vector.load %arg2[%c1, %c0_3] : memref<2x128xf32, #tpu.memory_space<vmem>>, vector<1x128xf32>
    %8 = vector.broadcast %6 : vector<128x1xf32> to vector<128x128xf32>
    %9 = vector.broadcast %7 : vector<1x128xf32> to vector<128x128xf32>
    %10 = arith.mulf %8, %9 : vector<128x128xf32>
    %11 = arith.addf %5, %10 : vector<128x128xf32>
    %c0_4 = arith.constant 0 : index
    %c0_5 = arith.constant 0 : index
    %12 = vector.load %arg3[%c0_4, %c0_5] : memref<1x128xf32, #tpu.memory_space<vmem>>, vector<1x128xf32>
    %13 = vector.broadcast %12 : vector<1x128xf32> to vector<128x128xf32>
    %14 = arith.addf %11, %13 : vector<128x128xf32>
    %cst = arith.constant 0.000000e+00 : f32
    %15 = vector.broadcast %cst : f32 to vector<128x128xf32>
    %16 = arith.maximumf %14, %15 : vector<128x128xf32>
    %17 = arith.truncf %16 : vector<128x128xf32> to vector<128x128xbf16>
    %c0_6 = arith.constant 0 : index
    %c0_7 = arith.constant 0 : index
    %18 = vector.load %arg4[%c0_6, %c0_7] : memref<128x128xbf16, #tpu.memory_space<vmem>>, vector<128x128xbf16>
    %cst_8 = arith.constant dense<0.000000e+00> : vector<128x128xf32>
    %19 = tpu.matmul %17, %18, %cst_8 {dimension_numbers = #tpu.dot_dimension_numbers<[1], [0], [0], [1], [0, 0, 1, 1], [], []>} : vector<128x128xbf16>, vector<128x128xbf16>, vector<128x128xf32> -> vector<128x128xf32>
    %c0_9 = arith.constant 0 : index
    %c0_10 = arith.constant 0 : index
    %20 = vector.load %arg5[%c0_9, %c0_10] : memref<1x128xf32, #tpu.memory_space<vmem>>, vector<1x128xf32>
    %21 = vector.broadcast %20 : vector<1x128xf32> to vector<128x128xf32>
    %22 = arith.addf %19, %21 : vector<128x128xf32>
    %cst_11 = arith.constant 0.000000e+00 : f32
    %23 = vector.broadcast %cst_11 : f32 to vector<128x128xf32>
    %24 = arith.maximumf %22, %23 : vector<128x128xf32>
    %c0_12 = arith.constant 0 : index
    %c0_13 = arith.constant 0 : index
    %25 = vector.load %arg6[%c0_12, %c0_13] : memref<1x128xf32, #tpu.memory_space<vmem>>, vector<1x128xf32>
    %26 = vector.broadcast %25 : vector<1x128xf32> to vector<128x128xf32>
    %27 = arith.mulf %24, %26 : vector<128x128xf32>
    %28 = vector.shape_cast %27 : vector<128x128xf32> to vector<1x128x128xf32>
    %cst_14 = arith.constant dense<0.000000e+00> : vector<1x128xf32>
    %29 = vector.multi_reduction <add>, %28, %cst_14 [2] : vector<1x128x128xf32> to vector<1x128xf32>
    %c0_15 = arith.constant 0 : index
    %30 = memref.load %arg7[%c0_15] : memref<1xf32, #tpu.memory_space<smem>>
    %31 = vector.broadcast %30 : f32 to vector<1x128xf32>
    %32 = arith.addf %29, %31 : vector<1x128xf32>
    %33 = arith.subf %32, %32 : vector<1x128xf32>
    %34 = arith.mulf %33, %33 : vector<1x128xf32>
    %cst_16 = arith.constant 9.99999997E-7 : f32
    %35 = vector.broadcast %cst_16 : f32 to vector<1x128xf32>
    %36 = arith.addf %34, %35 : vector<1x128xf32>
    %37 = math.rsqrt %36 : vector<1x128xf32>
    %38 = arith.mulf %33, %37 : vector<1x128xf32>
    %c0_17 = arith.constant 0 : index
    %39 = memref.load %arg8[%c0_17] : memref<1xf32, #tpu.memory_space<smem>>
    %40 = vector.broadcast %39 : f32 to vector<1x128xf32>
    %41 = arith.mulf %40, %38 : vector<1x128xf32>
    %c0_18 = arith.constant 0 : index
    %42 = memref.load %arg9[%c0_18] : memref<1xf32, #tpu.memory_space<smem>>
    %43 = vector.broadcast %42 : f32 to vector<1x128xf32>
    %44 = arith.addf %41, %43 : vector<1x128xf32>
    %c0_19 = arith.constant 0 : index
    %c0_20 = arith.constant 0 : index
    %45 = vector.load %arg10[%c0_19, %c0_20] : memref<1x128xf32, #tpu.memory_space<vmem>>, vector<1x128xf32>
    tpu.vector_store %arg10[%c0_19, %c0_20], %44 {strides = array<i32>} : memref<1x128xf32, #tpu.memory_space<vmem>>, vector<1x128xf32>,
    return
  }
  func.func @transform_0(%arg0: i32) -> (i32, i32) {
    %c0_i32 = arith.constant 0 : i32
    %c0_i32_0 = arith.constant 0 : i32
    return %arg0, %c0_i32 : i32, i32
  }
  func.func @transform_1(%arg0: i32) -> (i32, i32) {
    %c0_i32 = arith.constant 0 : i32
    %c0_i32_0 = arith.constant 0 : i32
    %c0_i32_1 = arith.constant 0 : i32
    return %c0_i32, %c0_i32_0 : i32, i32
  }
  func.func @transform_2(%arg0: i32) -> (i32, i32) {
    %c0_i32 = arith.constant 0 : i32
    %c0_i32_0 = arith.constant 0 : i32
    %c0_i32_1 = arith.constant 0 : i32
    return %c0_i32, %c0_i32_0 : i32, i32
  }
  func.func @transform_3(%arg0: i32) -> (i32, i32) {
    %c0_i32 = arith.constant 0 : i32
    %c0_i32_0 = arith.constant 0 : i32
    %c0_i32_1 = arith.constant 0 : i32
    return %c0_i32, %c0_i32_0 : i32, i32
  }
  func.func @transform_4(%arg0: i32) -> (i32, i32) {
    %c0_i32 = arith.constant 0 : i32
    %c0_i32_0 = arith.constant 0 : i32
    %c0_i32_1 = arith.constant 0 : i32
    return %c0_i32, %c0_i32_0 : i32, i32
  }
  func.func @transform_5(%arg0: i32) -> (i32, i32) {
    %c0_i32 = arith.constant 0 : i32
    %c0_i32_0 = arith.constant 0 : i32
    %c0_i32_1 = arith.constant 0 : i32
    return %c0_i32, %c0_i32_0 : i32, i32
  }
  func.func @transform_6(%arg0: i32) -> i32 {
    %c0_i32 = arith.constant 0 : i32
    %c0_i32_0 = arith.constant 0 : i32
    return %c0_i32 : i32
  }
  func.func @transform_7(%arg0: i32) -> i32 {
    %c0_i32 = arith.constant 0 : i32
    %c0_i32_0 = arith.constant 0 : i32
    return %c0_i32 : i32
  }
  func.func @transform_8(%arg0: i32) -> i32 {
    %c0_i32 = arith.constant 0 : i32
    %c0_i32_0 = arith.constant 0 : i32
    return %c0_i32 : i32
  }
  func.func @transform_9(%arg0: i32) -> (i32, i32) {
    %c0_i32 = arith.constant 0 : i32
    %c0_i32_0 = arith.constant 0 : i32
    return %arg0, %c0_i32 : i32, i32
  }
}

module attributes {stable_mosaic.version = 11 : i64} {
  func.func @fc_nn_kernel(%arg0: i32, %arg1: memref<128x2xf32, #tpu.memory_space<vmem>>, %arg2: memref<2x128xf32, #tpu.memory_space<vmem>>, %arg3: memref<1x128xf32, #tpu.memory_space<vmem>>, %arg4: memref<128x128xbf16, #tpu.memory_space<vmem>>, %arg5: memref<1x128xf32, #tpu.memory_space<vmem>>, %arg6: memref<1x128xf32, #tpu.memory_space<vmem>>, %arg7: memref<1xf32, #tpu.memory_space<smem>>, %arg8: memref<1xf32, #tpu.memory_space<smem>>, %arg9: memref<1xf32, #tpu.memory_space<smem>>, %arg10: memref<1x128xf32, #tpu.memory_space<vmem>>) attributes {dimension_semantics = [#tpu.dimension_semantics<parallel>], iteration_bounds = array<i64: 1>, scalar_prefetch = 0 : i64, scratch_operands = 0 : i64, tpu.core_type = #tpu.core_type<tc>, window_params = [{transform_indices = @transform_0, window_bounds = array<i64: 128, 2>}, {pipeline_mode = #tpu.pipeline_mode<synchronous>, transform_indices = @transform_1, window_bounds = array<i64: 2, 128>}, {pipeline_mode = #tpu.pipeline_mode<synchronous>, transform_indices = @transform_2, window_bounds = array<i64: 1, 128>}, {pipeline_mode = #tpu.pipeline_mode<synchronous>, transform_indices = @transform_3, window_bounds = array<i64: 128, 128>}, {pipeline_mode = #tpu.pipeline_mode<synchronous>, transform_indices = @transform_4, window_bounds = array<i64: 1, 128>}, {pipeline_mode = #tpu.pipeline_mode<synchronous>, transform_indices = @transform_5, window_bounds = array<i64: 1, 128>}, {transform_indices = @transform_6, window_bounds = array<i64: 1>}, {transform_indices = @transform_7, window_bounds = array<i64: 1>}, {transform_indices = @transform_8, window_bounds = array<i64: 1>}, {transform_indices = @transform_9, window_bounds = array<i64: 1, 128>}]} {
    %c0 = arith.constant 0 : index
    %c0_0 = arith.constant 0 : index
    %0 = vector.load %arg1[%c0, %c0_0] : memref<128x2xf32, #tpu.memory_space<vmem>>, vector<128x2xf32>
    %1 = vector.extract_strided_slice %0 {offsets = [0, 0], sizes = [128, 1], strides = [1, 1]} : vector<128x2xf32> to vector<128x1xf32>
    %c0_1 = arith.constant 0 : index
    %c0_2 = arith.constant 0 : index
    %2 = vector.load %arg2[%c0_1, %c0_2] : memref<2x128xf32, #tpu.memory_space<vmem>>, vector<1x128xf32>
    %3 = vector.broadcast %1 : vector<128x1xf32> to vector<128x128xf32>
    %4 = vector.broadcast %2 : vector<1x128xf32> to vector<128x128xf32>
    %5 = arith.mulf %3, %4 : vector<128x128xf32>
    %6 = vector.extract_strided_slice %0 {offsets = [0, 1], sizes = [128, 1], strides = [1, 1]} : vector<128x2xf32> to vector<128x1xf32>
    %c1 = arith.constant 1 : index
    %c0_3 = arith.constant 0 : index
    %7 = vector.load %arg2[%c1, %c0_3] : memref<2x128xf32, #tpu.memory_space<vmem>>, vector<1x128xf32>
    %8 = vector.broadcast %6 : vector<128x1xf32> to vector<128x128xf32>
    %9 = vector.broadcast %7 : vector<1x128xf32> to vector<128x128xf32>
    %10 = arith.mulf %8, %9 : vector<128x128xf32>
    %11 = arith.addf %5, %10 : vector<128x128xf32>
    %c0_4 = arith.constant 0 : index
    %c0_5 = arith.constant 0 : index
    %12 = vector.load %arg3[%c0_4, %c0_5] : memref<1x128xf32, #tpu.memory_space<vmem>>, vector<1x128xf32>
    %13 = vector.broadcast %12 : vector<1x128xf32> to vector<128x128xf32>
    %14 = arith.addf %11, %13 : vector<128x128xf32>
    %cst = arith.constant 0.000000e+00 : f32
    %15 = vector.broadcast %cst : f32 to vector<128x128xf32>
    %16 = arith.maximumf %14, %15 : vector<128x128xf32>
    %17 = arith.truncf %16 : vector<128x128xf32> to vector<128x128xbf16>
    %c0_6 = arith.constant 0 : index
    %c0_7 = arith.constant 0 : index
    %18 = vector.load %arg4[%c0_6, %c0_7] : memref<128x128xbf16, #tpu.memory_space<vmem>>, vector<128x128xbf16>
    %cst_8 = arith.constant dense<0.000000e+00> : vector<128x128xf32>
    %19 = tpu.matmul %17, %18, %cst_8 {dimension_numbers = #tpu.dot_dimension_numbers<[1], [0], [0], [1], [0, 0, 1, 1], [], []>} : vector<128x128xbf16>, vector<128x128xbf16>, vector<128x128xf32> -> vector<128x128xf32>
    %c0_9 = arith.constant 0 : index
    %c0_10 = arith.constant 0 : index
    %20 = vector.load %arg5[%c0_9, %c0_10] : memref<1x128xf32, #tpu.memory_space<vmem>>, vector<1x128xf32>
    %21 = vector.broadcast %20 : vector<1x128xf32> to vector<128x128xf32>
    %22 = arith.addf %19, %21 : vector<128x128xf32>
    %cst_11 = arith.constant 0.000000e+00 : f32
    %23 = vector.broadcast %cst_11 : f32 to vector<128x128xf32>
    %24 = arith.maximumf %22, %23 : vector<128x128xf32>
    %c0_12 = arith.constant 0 : index
    %c0_13 = arith.constant 0 : index
    %25 = vector.load %arg6[%c0_12, %c0_13] : memref<1x128xf32, #tpu.memory_space<vmem>>, vector<1x128xf32>
    %26 = vector.broadcast %25 : vector<1x128xf32> to vector<128x128xf32>
    %27 = arith.mulf %24, %26 : vector<128x128xf32>
    %28 = vector.shape_cast %27 : vector<128x128xf32> to vector<1x128x128xf32>
    %cst_14 = arith.constant dense<0.000000e+00> : vector<1x128xf32>
    %29 = vector.multi_reduction <add>, %28, %cst_14 [2] : vector<1x128x128xf32> to vector<1x128xf32>
    %c0_15 = arith.constant 0 : index
    %30 = memref.load %arg7[%c0_15] : memref<1xf32, #tpu.memory_space<smem>>
    %31 = vector.broadcast %30 : f32 to vector<1x128xf32>
    %32 = arith.addf %29, %31 : vector<1x128xf32>
    %33 = arith.subf %32, %32 : vector<1x128xf32>
    %34 = arith.mulf %33, %33 : vector<1x128xf32>
    %cst_16 = arith.constant 9.99999997E-7 : f32
    %35 = vector.broadcast %cst_16 : f32 to vector<1x128xf32>
    %36 = arith.addf %34, %35 : vector<1x128xf32>
    %37 = math.rsqrt %36 : vector<1x128xf32>
    %38 = arith.mulf %33, %37 : vector<1x128xf32>
    %c0_17 = arith.constant 0 : index
    %39 = memref.load %arg8[%c0_17] : memref<1xf32, #tpu.memory_space<smem>>
    %40 = vector.broadcast %39 : f32 to vector<1x128xf32>
    %41 = arith.mulf %40, %38 : vector<1x128xf32>
    %c0_18 = arith.constant 0 : index
    %42 = memref.load %arg9[%c0_18] : memref<1xf32, #tpu.memory_space<smem>>
    %43 = vector.broadcast %42 : f32 to vector<1x128xf32>
    %44 = arith.addf %41, %43 : vector<1x128xf32>
    %c0_19 = arith.constant 0 : index
    %c0_20 = arith.constant 0 : index
    %45 = vector.load %arg10[%c0_19, %c0_20] : memref<1x128xf32, #tpu.memory_space<vmem>>, vector<1x128xf32>
    tpu.vector_store %arg10[%c0_19, %c0_20], %44 {strides = array<i32>} : memref<1x128xf32, #tpu.memory_space<vmem>>, vector<1x128xf32>,
    return
  }
  func.func @transform_0(%arg0: i32) -> (i32, i32) {
    %c0_i32 = arith.constant 0 : i32
    %c0_i32_0 = arith.constant 0 : i32
    return %arg0, %c0_i32 : i32, i32
  }
  func.func @transform_1(%arg0: i32) -> (i32, i32) {
    %c0_i32 = arith.constant 0 : i32
    %c0_i32_0 = arith.constant 0 : i32
    %c0_i32_1 = arith.constant 0 : i32
    return %c0_i32, %c0_i32_0 : i32, i32
  }
  func.func @transform_2(%arg0: i32) -> (i32, i32) {
    %c0_i32 = arith.constant 0 : i32
    %c0_i32_0 = arith.constant 0 : i32
    %c0_i32_1 = arith.constant 0 : i32
    return %c0_i32, %c0_i32_0 : i32, i32
  }
  func.func @transform_3(%arg0: i32) -> (i32, i32) {
    %c0_i32 = arith.constant 0 : i32
    %c0_i32_0 = arith.constant 0 : i32
    %c0_i32_1 = arith.constant 0 : i32
    return %c0_i32, %c0_i32_0 : i32, i32
  }
  func.func @transform_4(%arg0: i32) -> (i32, i32) {
    %c0_i32 = arith.constant 0 : i32
    %c0_i32_0 = arith.constant 0 : i32
    %c0_i32_1 = arith.constant 0 : i32
    return %c0_i32, %c0_i32_0 : i32, i32
  }
  func.func @transform_5(%arg0: i32) -> (i32, i32) {
    %c0_i32 = arith.constant 0 : i32
    %c0_i32_0 = arith.constant 0 : i32
    %c0_i32_1 = arith.constant 0 : i32
    return %c0_i32, %c0_i32_0 : i32, i32
  }
  func.func @transform_6(%arg0: i32) -> i32 {
    %c0_i32 = arith.constant 0 : i32
    %c0_i32_0 = arith.constant 0 : i32
    return %c0_i32 : i32
  }
  func.func @transform_7(%arg0: i32) -> i32 {
    %c0_i32 = arith.constant 0 : i32
    %c0_i32_0 = arith.constant 0 : i32
    return %c0_i32 : i32
  }
  func.func @transform_8(%arg0: i32) -> i32 {
    %c0_i32 = arith.constant 0 : i32
    %c0_i32_0 = arith.constant 0 : i32
    return %c0_i32 : i32
  }
  func.func @transform_9(%arg0: i32) -> (i32, i32) {
    %c0_i32 = arith.constant 0 : i32
    %c0_i32_0 = arith.constant 0 : i32
    return %arg0, %c0_i32 : i32, i32
  }
}

</mosaic_0001>

<llo_original>
// kernel: tpu_custom_call.1
$region0: #{tpu_custom_call.1}
  #allocation0 [shape = 'u32[]', space=smem, size = 0x4, offset = 0x4, fixed_abs, tag = 'smem constant byte address 0x4 - core index']
  #allocation1 [shape = 'u32[144,128]{1,0:T(1,128)}', space=vmem, size = 0x12000, scoped, tag = 'internal scratch']
  #allocation2 [shape = 'f32[1]{0:T(128)S(6)}', space=smem, size = 0x200, scoped, tag = 'scoped memory for tpu_custom_call.1']
  #allocation3 [shape = 'f32[1]{0:T(128)S(6)}', space=smem, size = 0x200, scoped, tag = 'scoped memory for tpu_custom_call.1']
  #allocation4 [shape = 'f32[1]{0:T(128)S(6)}', space=smem, size = 0x200, scoped, tag = 'scoped memory for tpu_custom_call.1']
  %s0 = inlined_call_operand.vmem [shape: f32[128,2], index: 0, kind: input, shape index: {}]
  %s1 = inlined_call_operand.vmem [shape: f32[2,128], index: 1, kind: input, shape index: {}]
  %s2 = inlined_call_operand.vmem [shape: f32[1,128], index: 2, kind: input, shape index: {}]
  %s3 = inlined_call_operand.vmem [shape: bf16[128,128], index: 3, kind: input, shape index: {}]
  %s4 = inlined_call_operand.vmem [shape: f32[1,128], index: 4, kind: input, shape index: {}]
  %s5 = inlined_call_operand.vmem [shape: f32[1,128], index: 5, kind: input, shape index: {}]
  %s6 = inlined_call_operand.<no memory space> [shape: f32[1], index: 6, kind: input, shape index: {}]
  %s7 = inlined_call_operand.<no memory space> [shape: f32[1], index: 7, kind: input, shape index: {}]
  %s8 = inlined_call_operand.<no memory space> [shape: f32[1], index: 8, kind: input, shape index: {}]
  %s9 = inlined_call_operand.hbm [shape: f32[1,128], index: 9, kind: output, shape index: {}]
  %s10 = sld [smem:[#allocation0]]
  $region46: #{tpu_custom_call.1} parent=0
    _
  %s12 = ssub.s32 1, %s10
  %s13 = scalar_select 0, %s12, %s10
  %14 = sst [smem:[#allocation2]] %s6
  %15 = sst [smem:[#allocation3]] %s7
  %16 = sst [smem:[#allocation4]] %s8
  $region1: #{tpu_custom_call.1} parent=0
    #allocation5 [shape = 'u8[512]{0}', space=vmem, size = 0x400, scoped, tag = 'output window, operand 0, single buffered']
    #allocation6 [shape = 's32[1]{0}', space=sflag, size = 0x4, scoped, tag = 'scoped memory for tpu_custom_call.1']
    %17 = vsyncpa [#allocation6], 0
    // Predicated region
    $region2: #{tpu_custom_call.1} parent=1 // pred_check
      _
    $region3: #{tpu_custom_call.1} parent=1 // pred_check_branch
      %19 = sbr.rel (0) target = $region5
    $region4: #{tpu_custom_call.1} parent=1 // pred_region
      _
    $region5: #{tpu_custom_call.1} parent=1 // pred_fallthru
      _
    // Predicated region
    $region6: #{tpu_custom_call.1} parent=1 // pred_check
      _
    $region7: #{tpu_custom_call.1} parent=1 // pred_check_branch
      %21 = sbr.rel (0) target = $region9
    $region8: #{tpu_custom_call.1} parent=1 // pred_region
      _
    $region9: #{tpu_custom_call.1} parent=1 // pred_fallthru
      _
    // Predicated region
    $region10: #{tpu_custom_call.1} parent=1 // pred_check
      _
    $region11: #{tpu_custom_call.1} parent=1 // pred_check_branch
      %23 = sbr.rel (0) target = $region13
    $region12: #{tpu_custom_call.1} parent=1 // pred_region
      _
    $region13: #{tpu_custom_call.1} parent=1 // pred_fallthru
      _
    // Predicated region
    $region14: #{tpu_custom_call.1} parent=1 // pred_check
      _
    $region15: #{tpu_custom_call.1} parent=1 // pred_check_branch
      %25 = sbr.rel (0) target = $region17
    $region16: #{tpu_custom_call.1} parent=1 // pred_region
      _
    $region17: #{tpu_custom_call.1} parent=1 // pred_fallthru
      _
    // Predicated region
    $region18: #{tpu_custom_call.1} parent=1 // pred_check
      _
    $region19: #{tpu_custom_call.1} parent=1 // pred_check_branch
      %27 = sbr.rel (0) target = $region21
    $region20: #{tpu_custom_call.1} parent=1 // pred_region
      _
    $region21: #{tpu_custom_call.1} parent=1 // pred_fallthru
      _
    // Predicated region
    $region22: #{tpu_custom_call.1} parent=1 // pred_check
      _
    $region23: #{tpu_custom_call.1} parent=1 // pred_check_branch
      %29 = sbr.rel (0) target = $region25
    $region24: #{tpu_custom_call.1} parent=1 // pred_region
      _
    $region25: #{tpu_custom_call.1} parent=1 // pred_fallthru
      _
    // Predicated region
    $region26: #{tpu_custom_call.1} parent=1 // pred_check
      _
    $region27: #{tpu_custom_call.1} parent=1 // pred_check_branch
      %31 = sbr.rel (0) target = $region29
    $region28: #{tpu_custom_call.1} parent=1 // pred_region
      _
    $region29: #{tpu_custom_call.1} parent=1 // pred_fallthru
      _
    // Predicated region
    $region30: #{tpu_custom_call.1} parent=1 // pred_check
      _
    $region31: #{tpu_custom_call.1} parent=1 // pred_check_branch
      %33 = sbr.rel (0) target = $region33
    $region32: #{tpu_custom_call.1} parent=1 // pred_region
      _
    $region33: #{tpu_custom_call.1} parent=1 // pred_fallthru
      _
    // Predicated region
    $region34: #{tpu_custom_call.1} parent=1 // pred_check
      _
    $region35: #{tpu_custom_call.1} parent=1 // pred_check_branch
      %35 = sbr.rel (0) target = $region37
    $region36: #{tpu_custom_call.1} parent=1 // pred_region
      _
    $region37: #{tpu_custom_call.1} parent=1 // pred_fallthru
      _
    %v37 = vld [vmem:[%s0] sm:$0xff]
    %v38 = vld [vmem:[%s0 + $0x8] sm:$0xff]
    %v39 = vld [vmem:[%s0 + $0x10] sm:$0xff]
    %v40 = vld [vmem:[%s0 + $0x18] sm:$0xff]
    %v41 = vld [vmem:[%s0 + $0x20] sm:$0xff]
    %v42 = vld [vmem:[%s0 + $0x28] sm:$0xff]
    %v43 = vld [vmem:[%s0 + $0x30] sm:$0xff]
    %v44 = vld [vmem:[%s0 + $0x38] sm:$0xff]
    %v45 = vld [vmem:[%s0 + $0x40] sm:$0xff]
    %v46 = vld [vmem:[%s0 + $0x48] sm:$0xff]
    %v47 = vld [vmem:[%s0 + $0x50] sm:$0xff]
    %v48 = vld [vmem:[%s0 + $0x58] sm:$0xff]
    %v49 = vld [vmem:[%s0 + $0x60] sm:$0xff]
    %v50 = vld [vmem:[%s0 + $0x68] sm:$0xff]
    %v51 = vld [vmem:[%s0 + $0x70] sm:$0xff]
    %v52 = vld [vmem:[%s0 + $0x78] sm:$0xff]
    %v53 = vld [vmem:[%s1] sm:$0x1]
    %55 = vset.pattern.permute.xlu0 0
    %56 = vperm.xlu0 %55, %v37
    %v57 = vpop.permute.xlu0 %56
    %60 = vset.pattern.permute.xlu0 0
    %61 = vperm.xlu0 %60, %v38
    %v62 = vpop.permute.xlu0 %61
    %65 = vset.pattern.permute.xlu0 0
    %66 = vperm.xlu0 %65, %v39
    %v67 = vpop.permute.xlu0 %66
    %70 = vset.pattern.permute.xlu0 0
    %71 = vperm.xlu0 %70, %v40
    %v72 = vpop.permute.xlu0 %71
    %75 = vset.pattern.permute.xlu0 0
    %76 = vperm.xlu0 %75, %v41
    %v77 = vpop.permute.xlu0 %76
    %80 = vset.pattern.permute.xlu0 0
    %81 = vperm.xlu0 %80, %v42
    %v82 = vpop.permute.xlu0 %81
    %85 = vset.pattern.permute.xlu0 0
    %86 = vperm.xlu0 %85, %v43
    %v87 = vpop.permute.xlu0 %86
    %90 = vset.pattern.permute.xlu0 0
    %91 = vperm.xlu0 %90, %v44
    %v92 = vpop.permute.xlu0 %91
    %95 = vset.pattern.permute.xlu0 0
    %96 = vperm.xlu0 %95, %v45
    %v97 = vpop.permute.xlu0 %96
    %100 = vset.pattern.permute.xlu0 0
    %101 = vperm.xlu0 %100, %v46
    %v102 = vpop.permute.xlu0 %101
    %105 = vset.pattern.permute.xlu0 0
    %106 = vperm.xlu0 %105, %v47
    %v107 = vpop.permute.xlu0 %106
    %110 = vset.pattern.permute.xlu0 0
    %111 = vperm.xlu0 %110, %v48
    %v112 = vpop.permute.xlu0 %111
    %115 = vset.pattern.permute.xlu0 0
    %116 = vperm.xlu0 %115, %v49
    %v117 = vpop.permute.xlu0 %116
    %120 = vset.pattern.permute.xlu0 0
    %121 = vperm.xlu0 %120, %v50
    %v122 = vpop.permute.xlu0 %121
    %125 = vset.pattern.permute.xlu0 0
    %126 = vperm.xlu0 %125, %v51
    %v127 = vpop.permute.xlu0 %126
    %130 = vset.pattern.permute.xlu0 0
    %131 = vperm.xlu0 %130, %v52
    %v132 = vpop.permute.xlu0 %131
    %v134 = vlaneseq
    %v135 = vshrl.u32 %v134, 7
    %v136 = vsub.s32 0, %v135
    %v137 = vrot.slane %v53, %v136
    %v138 = vmul.f32 %v57, %v137
    %v139 = vmul.f32 %v62, %v137
    %v140 = vmul.f32 %v67, %v137
    %v141 = vmul.f32 %v72, %v137
    %v142 = vmul.f32 %v77, %v137
    %v143 = vmul.f32 %v82, %v137
    %v144 = vmul.f32 %v87, %v137
    %v145 = vmul.f32 %v92, %v137
    %v146 = vmul.f32 %v97, %v137
    %v147 = vmul.f32 %v102, %v137
    %v148 = vmul.f32 %v107, %v137
    %v149 = vmul.f32 %v112, %v137
    %v150 = vmul.f32 %v117, %v137
    %v151 = vmul.f32 %v122, %v137
    %v152 = vmul.f32 %v127, %v137
    %v153 = vmul.f32 %v132, %v137
    %v154 = vld [vmem:[%s1 + $0x1] sm:$0x1]
    %155 = vset.pattern.permute.xlu0 1
    %156 = vperm.xlu0 %155, %v37
    %v157 = vpop.permute.xlu0 %156
    %159 = vset.pattern.permute.xlu0 1
    %160 = vperm.xlu0 %159, %v38
    %v161 = vpop.permute.xlu0 %160
    %163 = vset.pattern.permute.xlu0 1
    %164 = vperm.xlu0 %163, %v39
    %v165 = vpop.permute.xlu0 %164
    %167 = vset.pattern.permute.xlu0 1
    %168 = vperm.xlu0 %167, %v40
    %v169 = vpop.permute.xlu0 %168
    %171 = vset.pattern.permute.xlu0 1
    %172 = vperm.xlu0 %171, %v41
    %v173 = vpop.permute.xlu0 %172
    %175 = vset.pattern.permute.xlu0 1
    %176 = vperm.xlu0 %175, %v42
    %v177 = vpop.permute.xlu0 %176
    %179 = vset.pattern.permute.xlu0 1
    %180 = vperm.xlu0 %179, %v43
    %v181 = vpop.permute.xlu0 %180
    %183 = vset.pattern.permute.xlu0 1
    %184 = vperm.xlu0 %183, %v44
    %v185 = vpop.permute.xlu0 %184
    %187 = vset.pattern.permute.xlu0 1
    %188 = vperm.xlu0 %187, %v45
    %v189 = vpop.permute.xlu0 %188
    %191 = vset.pattern.permute.xlu0 1
    %192 = vperm.xlu0 %191, %v46
    %v193 = vpop.permute.xlu0 %192
    %195 = vset.pattern.permute.xlu0 1
    %196 = vperm.xlu0 %195, %v47
    %v197 = vpop.permute.xlu0 %196
    %199 = vset.pattern.permute.xlu0 1
    %200 = vperm.xlu0 %199, %v48
    %v201 = vpop.permute.xlu0 %200
    %203 = vset.pattern.permute.xlu0 1
    %204 = vperm.xlu0 %203, %v49
    %v205 = vpop.permute.xlu0 %204
    %207 = vset.pattern.permute.xlu0 1
    %208 = vperm.xlu0 %207, %v50
    %v209 = vpop.permute.xlu0 %208
    %211 = vset.pattern.permute.xlu0 1
    %212 = vperm.xlu0 %211, %v51
    %v213 = vpop.permute.xlu0 %212
    %215 = vset.pattern.permute.xlu0 1
    %216 = vperm.xlu0 %215, %v52
    %v217 = vpop.permute.xlu0 %216
    %v219 = vlaneseq
    %v220 = vshrl.u32 %v219, 7
    %v221 = vsub.s32 0, %v220
    %v222 = vrot.slane %v154, %v221
    %v223 = vmul.f32 %v157, %v222
    %v224 = vmul.f32 %v161, %v222
    %v225 = vmul.f32 %v165, %v222
    %v226 = vmul.f32 %v169, %v222
    %v227 = vmul.f32 %v173, %v222
    %v228 = vmul.f32 %v177, %v222
    %v229 = vmul.f32 %v181, %v222
    %v230 = vmul.f32 %v185, %v222
    %v231 = vmul.f32 %v189, %v222
    %v232 = vmul.f32 %v193, %v222
    %v233 = vmul.f32 %v197, %v222
    %v234 = vmul.f32 %v201, %v222
    %v235 = vmul.f32 %v205, %v222
    %v236 = vmul.f32 %v209, %v222
    %v237 = vmul.f32 %v213, %v222
    %v238 = vmul.f32 %v217, %v222
    %v239 = vadd.f32 %v138, %v223
    %v240 = vadd.f32 %v139, %v224
    %v241 = vadd.f32 %v140, %v225
    %v242 = vadd.f32 %v141, %v226
    %v243 = vadd.f32 %v142, %v227
    %v244 = vadd.f32 %v143, %v228
    %v245 = vadd.f32 %v144, %v229
    %v246 = vadd.f32 %v145, %v230
    %v247 = vadd.f32 %v146, %v231
    %v248 = vadd.f32 %v147, %v232
    %v249 = vadd.f32 %v148, %v233
    %v250 = vadd.f32 %v149, %v234
    %v251 = vadd.f32 %v150, %v235
    %v252 = vadd.f32 %v151, %v236
    %v253 = vadd.f32 %v152, %v237
    %v254 = vadd.f32 %v153, %v238
    %v255 = vld [vmem:[%s2] sm:$0x1]
    %v257 = vlaneseq
    %v258 = vshrl.u32 %v257, 7
    %v259 = vsub.s32 0, %v258
    %v260 = vrot.slane %v255, %v259
    %v262 = vadd.f32 %v239, %v260
    %v263 = vadd.f32 %v240, %v260
    %v264 = vadd.f32 %v241, %v260
    %v265 = vadd.f32 %v242, %v260
    %v266 = vadd.f32 %v243, %v260
    %v267 = vadd.f32 %v244, %v260
    %v268 = vadd.f32 %v245, %v260
    %v269 = vadd.f32 %v246, %v260
    %v270 = vadd.f32 %v247, %v260
    %v271 = vadd.f32 %v248, %v260
    %v272 = vadd.f32 %v249, %v260
    %v273 = vadd.f32 %v250, %v260
    %v274 = vadd.f32 %v251, %v260
    %v275 = vadd.f32 %v252, %v260
    %v276 = vadd.f32 %v253, %v260
    %v277 = vadd.f32 %v254, %v260
    %v278 = vmax.f32 %v262, 0.0
    %v279 = vmax.f32 %v263, 0.0
    %v280 = vmax.f32 %v264, 0.0
    %v281 = vmax.f32 %v265, 0.0
    %v282 = vmax.f32 %v266, 0.0
    %v283 = vmax.f32 %v267, 0.0
    %v284 = vmax.f32 %v268, 0.0
    %v285 = vmax.f32 %v269, 0.0
    %v286 = vmax.f32 %v270, 0.0
    %v287 = vmax.f32 %v271, 0.0
    %v288 = vmax.f32 %v272, 0.0
    %v289 = vmax.f32 %v273, 0.0
    %v290 = vmax.f32 %v274, 0.0
    %v291 = vmax.f32 %v275, 0.0
    %v292 = vmax.f32 %v276, 0.0
    %v293 = vmax.f32 %v277, 0.0
    %v294 = vpack.c.bf16 %v279, %v278
    %v295 = vpack.c.bf16 %v281, %v280
    %v296 = vpack.c.bf16 %v283, %v282
    %v297 = vpack.c.bf16 %v285, %v284
    %v298 = vpack.c.bf16 %v287, %v286
    %v299 = vpack.c.bf16 %v289, %v288
    %v300 = vpack.c.bf16 %v291, %v290
    %v301 = vpack.c.bf16 %v293, %v292
    %v302 = vld [vmem:[%s3] sm:$0xf]
    %v303 = vld [vmem:[%s3 + $0x4] sm:$0xf]
    %v304 = vld [vmem:[%s3 + $0x8] sm:$0xf]
    %v305 = vld [vmem:[%s3 + $0xc] sm:$0xf]
    %v306 = vld [vmem:[%s3 + $0x10] sm:$0xf]
    %v307 = vld [vmem:[%s3 + $0x14] sm:$0xf]
    %v308 = vld [vmem:[%s3 + $0x18] sm:$0xf]
    %v309 = vld [vmem:[%s3 + $0x1c] sm:$0xf]
    %v310 = vld [vmem:[%s3 + $0x20] sm:$0xf]
    %v311 = vld [vmem:[%s3 + $0x24] sm:$0xf]
    %v312 = vld [vmem:[%s3 + $0x28] sm:$0xf]
    %v313 = vld [vmem:[%s3 + $0x2c] sm:$0xf]
    %v314 = vld [vmem:[%s3 + $0x30] sm:$0xf]
    %v315 = vld [vmem:[%s3 + $0x34] sm:$0xf]
    %v316 = vld [vmem:[%s3 + $0x38] sm:$0xf]
    %v317 = vld [vmem:[%s3 + $0x3c] sm:$0xf]
    %v318 = vld [vmem:[%s4] sm:$0x1]
    %v320 = vlaneseq
    %v321 = vshrl.u32 %v320, 7
    %v322 = vsub.s32 0, %v321
    %v323 = vrot.slane %v318, %v322
    %v341 = vunpack.c.l.b16 %v302
    %v342 = vunpack.c.l.b16 %v303
    %v343 = vunpack.c.l.b16 %v304
    %v344 = vunpack.c.l.b16 %v305
    %v345 = vunpack.c.l.b16 %v306
    %v346 = vunpack.c.l.b16 %v307
    %v347 = vunpack.c.l.b16 %v308
    %v348 = vunpack.c.l.b16 %v309
    %v349 = vunpack.c.l.b16 %v310
    %v350 = vunpack.c.l.b16 %v311
    %v351 = vunpack.c.l.b16 %v312
    %v352 = vunpack.c.l.b16 %v313
    %v353 = vunpack.c.l.b16 %v314
    %v354 = vunpack.c.l.b16 %v315
    %v355 = vunpack.c.l.b16 %v316
    %v356 = vunpack.c.l.b16 %v317
    %v357 = vpack.c.b16 %v342, %v341
    %v358 = vpack.c.b16 %v344, %v343
    %v359 = vpack.c.b16 %v346, %v345
    %v360 = vpack.c.b16 %v348, %v347
    %v361 = vpack.c.b16 %v350, %v349
    %v362 = vpack.c.b16 %v352, %v351
    %v363 = vpack.c.b16 %v354, %v353
    %v364 = vpack.c.b16 %v356, %v355
    %373 = vmatprep.subr.bf16.mxu0 0
    %374 = vmatpush1.bf16.msra.mxu0 %v364
    %375 = vmatprep.subr.bf16.mxu0 0
    %376 = vmatpush1.bf16.msra.mxu0 %v363
    %377 = vmatprep.subr.bf16.mxu0 0
    %378 = vmatpush1.bf16.msra.mxu0 %v362
    %379 = vmatprep.subr.bf16.mxu0 0
    %380 = vmatpush1.bf16.msra.mxu0 %v361
    %381 = vmatprep.subr.bf16.mxu0 0
    %382 = vmatpush1.bf16.msra.mxu0 %v360
    %383 = vmatprep.subr.bf16.mxu0 0
    %384 = vmatpush1.bf16.msra.mxu0 %v359
    %385 = vmatprep.subr.bf16.mxu0 0
    %386 = vmatpush1.bf16.msra.mxu0 %v358
    %387 = vmatprep.subr.bf16.mxu0 0
    %388 = vmatpush1.bf16.msra.mxu0 %v357
    %389 = vmatprep.subr.bf16.mxu0 0
    %390 = vmatpush2.bf16.msra.mxu0 0
    %391 = vmatprep.subr.bf16.mxu0 0
    %392 = vmatpush2.bf16.msra.mxu0 0
    %393 = vmatprep.subr.bf16.mxu0 0
    %394 = vmatpush2.bf16.msra.mxu0 0
    %395 = vmatprep.subr.bf16.mxu0 0
    %396 = vmatpush2.bf16.msra.mxu0 0
    %397 = vmatprep.subr.bf16.mxu0 0
    %398 = vmatpush2.bf16.msra.mxu0 0
    %399 = vmatprep.subr.bf16.mxu0 0
    %400 = vmatpush2.bf16.msra.mxu0 0
    %401 = vmatprep.subr.bf16.mxu0 0
    %402 = vmatpush2.bf16.msra.mxu0 0
    %403 = vmatprep.subr.bf16.mxu0 0
    %404 = vmatpush2.bf16.msra.mxu0 0
    %405 = vmatprep.mubr.bf16.mxu0 0
    %406 = vmatmul.mubr.bf16.gmra.mxu0 %v294
    %v407 = vpop.f32.mrf.mxu0
    %v408 = vadd.f32 %v323, %v407
    %v409 = vpop.f32.mrf.mxu0
    %v410 = vpop.f32.mrf.mxu0
    %v411 = vadd.f32 %v323, %v410
    %v412 = vpop.f32.mrf.mxu0
    %413 = vmatprep.mubr.bf16.mxu0 0
    %414 = vmatmul.mubr.bf16.gmra.mxu0 %v295
    %v415 = vpop.f32.mrf.mxu0
    %v416 = vadd.f32 %v323, %v415
    %v417 = vpop.f32.mrf.mxu0
    %v418 = vpop.f32.mrf.mxu0
    %v419 = vadd.f32 %v323, %v418
    %v420 = vpop.f32.mrf.mxu0
    %421 = vmatprep.mubr.bf16.mxu0 0
    %422 = vmatmul.mubr.bf16.gmra.mxu0 %v296
    %v423 = vpop.f32.mrf.mxu0
    %v424 = vadd.f32 %v323, %v423
    %v425 = vpop.f32.mrf.mxu0
    %v426 = vpop.f32.mrf.mxu0
    %v427 = vadd.f32 %v323, %v426
    %v428 = vpop.f32.mrf.mxu0
    %429 = vmatprep.mubr.bf16.mxu0 0
    %430 = vmatmul.mubr.bf16.gmra.mxu0 %v297
    %v431 = vpop.f32.mrf.mxu0
    %v432 = vadd.f32 %v323, %v431
    %v433 = vpop.f32.mrf.mxu0
    %v434 = vpop.f32.mrf.mxu0
    %v435 = vadd.f32 %v323, %v434
    %v436 = vpop.f32.mrf.mxu0
    %437 = vmatprep.mubr.bf16.mxu0 0
    %438 = vmatmul.mubr.bf16.gmra.mxu0 %v298
    %v439 = vpop.f32.mrf.mxu0
    %v440 = vadd.f32 %v323, %v439
    %v441 = vpop.f32.mrf.mxu0
    %v442 = vpop.f32.mrf.mxu0
    %v443 = vadd.f32 %v323, %v442
    %v444 = vpop.f32.mrf.mxu0
    %445 = vmatprep.mubr.bf16.mxu0 0
    %446 = vmatmul.mubr.bf16.gmra.mxu0 %v299
    %v447 = vpop.f32.mrf.mxu0
    %v448 = vadd.f32 %v323, %v447
    %v449 = vpop.f32.mrf.mxu0
    %v450 = vpop.f32.mrf.mxu0
    %v451 = vadd.f32 %v323, %v450
    %v452 = vpop.f32.mrf.mxu0
    %453 = vmatprep.mubr.bf16.mxu0 0
    %454 = vmatmul.mubr.bf16.gmra.mxu0 %v300
    %v455 = vpop.f32.mrf.mxu0
    %v456 = vadd.f32 %v323, %v455
    %v457 = vpop.f32.mrf.mxu0
    %v458 = vpop.f32.mrf.mxu0
    %v459 = vadd.f32 %v323, %v458
    %v460 = vpop.f32.mrf.mxu0
    %461 = vmatprep.mubr.bf16.mxu0 0
    %462 = vmatmul.mubr.bf16.gmra.mxu0 %v301
    %v463 = vpop.f32.mrf.mxu0
    %v464 = vadd.f32 %v323, %v463
    %v465 = vpop.f32.mrf.mxu0
    %v466 = vpop.f32.mrf.mxu0
    %v467 = vadd.f32 %v323, %v466
    %v468 = vpop.f32.mrf.mxu0
    %469 = vdwg.mxu0
    %v470 = vmax.f32 %v408, 0.0
    %v471 = vmax.f32 %v411, 0.0
    %v472 = vmax.f32 %v416, 0.0
    %v473 = vmax.f32 %v419, 0.0
    %v474 = vmax.f32 %v424, 0.0
    %v475 = vmax.f32 %v427, 0.0
    %v476 = vmax.f32 %v432, 0.0
    %v477 = vmax.f32 %v435, 0.0
    %v478 = vmax.f32 %v440, 0.0
    %v479 = vmax.f32 %v443, 0.0
    %v480 = vmax.f32 %v448, 0.0
    %v481 = vmax.f32 %v451, 0.0
    %v482 = vmax.f32 %v456, 0.0
    %v483 = vmax.f32 %v459, 0.0
    %v484 = vmax.f32 %v464, 0.0
    %v485 = vmax.f32 %v467, 0.0
    %v486 = vld [vmem:[%s5] sm:$0x1]
    %v488 = vlaneseq
    %v489 = vshrl.u32 %v488, 7
    %v490 = vsub.s32 0, %v489
    %v491 = vrot.slane %v486, %v490
    %v493 = vmul.f32 %v470, %v491
    %v494 = vmul.f32 %v471, %v491
    %v495 = vmul.f32 %v472, %v491
    %v496 = vmul.f32 %v473, %v491
    %v497 = vmul.f32 %v474, %v491
    %v498 = vmul.f32 %v475, %v491
    %v499 = vmul.f32 %v476, %v491
    %v500 = vmul.f32 %v477, %v491
    %v501 = vmul.f32 %v478, %v491
    %v502 = vmul.f32 %v479, %v491
    %v503 = vmul.f32 %v480, %v491
    %v504 = vmul.f32 %v481, %v491
    %v505 = vmul.f32 %v482, %v491
    %v506 = vmul.f32 %v483, %v491
    %v507 = vmul.f32 %v484, %v491
    %v508 = vmul.f32 %v485, %v491
    %509 = vadd.xlane.f32.xlu0 %v493
    %v510 = vpop.xlane.xlu0 %509
    %511 = vadd.xlane.f32.xlu0 %v494
    %v512 = vpop.xlane.xlu0 %511
    %513 = vadd.xlane.f32.xlu0 %v495
    %v514 = vpop.xlane.xlu0 %513
    %515 = vadd.xlane.f32.xlu0 %v496
    %v516 = vpop.xlane.xlu0 %515
    %517 = vadd.xlane.f32.xlu0 %v497
    %v518 = vpop.xlane.xlu0 %517
    %519 = vadd.xlane.f32.xlu0 %v498
    %v520 = vpop.xlane.xlu0 %519
    %521 = vadd.xlane.f32.xlu0 %v499
    %v522 = vpop.xlane.xlu0 %521
    %523 = vadd.xlane.f32.xlu0 %v500
    %v524 = vpop.xlane.xlu0 %523
    %525 = vadd.xlane.f32.xlu0 %v501
    %v526 = vpop.xlane.xlu0 %525
    %527 = vadd.xlane.f32.xlu0 %v502
    %v528 = vpop.xlane.xlu0 %527
    %529 = vadd.xlane.f32.xlu0 %v503
    %v530 = vpop.xlane.xlu0 %529
    %531 = vadd.xlane.f32.xlu0 %v504
    %v532 = vpop.xlane.xlu0 %531
    %533 = vadd.xlane.f32.xlu0 %v505
    %v534 = vpop.xlane.xlu0 %533
    %535 = vadd.xlane.f32.xlu0 %v506
    %v536 = vpop.xlane.xlu0 %535
    %537 = vadd.xlane.f32.xlu0 %v507
    %v538 = vpop.xlane.xlu0 %537
    %539 = vadd.xlane.f32.xlu0 %v508
    %v540 = vpop.xlane.xlu0 %539
    %s541 = sld [smem:[#allocation2]]
    %v542 = vstv %s541
    %v543 = vadd.f32 %v510, %v542
    %v544 = vadd.f32 %v512, %v542
    %v545 = vadd.f32 %v514, %v542
    %v546 = vadd.f32 %v516, %v542
    %v547 = vadd.f32 %v518, %v542
    %v548 = vadd.f32 %v520, %v542
    %v549 = vadd.f32 %v522, %v542
    %v550 = vadd.f32 %v524, %v542
    %v551 = vadd.f32 %v526, %v542
    %v552 = vadd.f32 %v528, %v542
    %v553 = vadd.f32 %v530, %v542
    %v554 = vadd.f32 %v532, %v542
    %v555 = vadd.f32 %v534, %v542
    %v556 = vadd.f32 %v536, %v542
    %v557 = vadd.f32 %v538, %v542
    %v558 = vadd.f32 %v540, %v542
    %v559 = vsub.f32 %v543, %v543
    %v560 = vsub.f32 %v544, %v544
    %v561 = vsub.f32 %v545, %v545
    %v562 = vsub.f32 %v546, %v546
    %v563 = vsub.f32 %v547, %v547
    %v564 = vsub.f32 %v548, %v548
    %v565 = vsub.f32 %v549, %v549
    %v566 = vsub.f32 %v550, %v550
    %v567 = vsub.f32 %v551, %v551
    %v568 = vsub.f32 %v552, %v552
    %v569 = vsub.f32 %v553, %v553
    %v570 = vsub.f32 %v554, %v554
    %v571 = vsub.f32 %v555, %v555
    %v572 = vsub.f32 %v556, %v556
    %v573 = vsub.f32 %v557, %v557
    %v574 = vsub.f32 %v558, %v558
    %v575 = vmul.f32 %v559, %v559
    %v576 = vmul.f32 %v560, %v560
    %v577 = vmul.f32 %v561, %v561
    %v578 = vmul.f32 %v562, %v562
    %v579 = vmul.f32 %v563, %v563
    %v580 = vmul.f32 %v564, %v564
    %v581 = vmul.f32 %v565, %v565
    %v582 = vmul.f32 %v566, %v566
    %v583 = vmul.f32 %v567, %v567
    %v584 = vmul.f32 %v568, %v568
    %v585 = vmul.f32 %v569, %v569
    %v586 = vmul.f32 %v570, %v570
    %v587 = vmul.f32 %v571, %v571
    %v588 = vmul.f32 %v572, %v572
    %v589 = vmul.f32 %v573, %v573
    %v590 = vmul.f32 %v574, %v574
    %v591 = vadd.f32 %v575, 1e-06
    %v592 = vadd.f32 %v576, 1e-06
    %v593 = vadd.f32 %v577, 1e-06
    %v594 = vadd.f32 %v578, 1e-06
    %v595 = vadd.f32 %v579, 1e-06
    %v596 = vadd.f32 %v580, 1e-06
    %v597 = vadd.f32 %v581, 1e-06
    %v598 = vadd.f32 %v582, 1e-06
    %v599 = vadd.f32 %v583, 1e-06
    %v600 = vadd.f32 %v584, 1e-06
    %v601 = vadd.f32 %v585, 1e-06
    %v602 = vadd.f32 %v586, 1e-06
    %v603 = vadd.f32 %v587, 1e-06
    %v604 = vadd.f32 %v588, 1e-06
    %v605 = vadd.f32 %v589, 1e-06
    %v606 = vadd.f32 %v590, 1e-06
    %v607 = vrsqrt.pop %v591
    %v608 = vrsqrt.pop %v592
    %v609 = vrsqrt.pop %v593
    %v610 = vrsqrt.pop %v594
    %v611 = vrsqrt.pop %v595
    %v612 = vrsqrt.pop %v596
    %v613 = vrsqrt.pop %v597
    %v614 = vrsqrt.pop %v598
    %v615 = vrsqrt.pop %v599
    %v616 = vrsqrt.pop %v600
    %v617 = vrsqrt.pop %v601
    %v618 = vrsqrt.pop %v602
    %v619 = vrsqrt.pop %v603
    %v620 = vrsqrt.pop %v604
    %v621 = vrsqrt.pop %v605
    %v622 = vrsqrt.pop %v606
    %v623 = vmul.f32 %v559, %v607
    %v624 = vmul.f32 %v560, %v608
    %v625 = vmul.f32 %v561, %v609
    %v626 = vmul.f32 %v562, %v610
    %v627 = vmul.f32 %v563, %v611
    %v628 = vmul.f32 %v564, %v612
    %v629 = vmul.f32 %v565, %v613
    %v630 = vmul.f32 %v566, %v614
    %v631 = vmul.f32 %v567, %v615
    %v632 = vmul.f32 %v568, %v616
    %v633 = vmul.f32 %v569, %v617
    %v634 = vmul.f32 %v570, %v618
    %v635 = vmul.f32 %v571, %v619
    %v636 = vmul.f32 %v572, %v620
    %v637 = vmul.f32 %v573, %v621
    %v638 = vmul.f32 %v574, %v622
    %s639 = sld [smem:[#allocation3]]
    %v640 = vstv %s639
    %v641 = vmul.f32 %v640, %v623
    %v642 = vmul.f32 %v640, %v624
    %v643 = vmul.f32 %v640, %v625
    %v644 = vmul.f32 %v640, %v626
    %v645 = vmul.f32 %v640, %v627
    %v646 = vmul.f32 %v640, %v628
    %v647 = vmul.f32 %v640, %v629
    %v648 = vmul.f32 %v640, %v630
    %v649 = vmul.f32 %v640, %v631
    %v650 = vmul.f32 %v640, %v632
    %v651 = vmul.f32 %v640, %v633
    %v652 = vmul.f32 %v640, %v634
    %v653 = vmul.f32 %v640, %v635
    %v654 = vmul.f32 %v640, %v636
    %v655 = vmul.f32 %v640, %v637
    %v656 = vmul.f32 %v640, %v638
    %s657 = sld [smem:[#allocation4]]
    %v658 = vstv %s657
    %v659 = vadd.f32 %v641, %v658
    %v660 = vadd.f32 %v642, %v658
    %v661 = vadd.f32 %v643, %v658
    %v662 = vadd.f32 %v644, %v658
    %v663 = vadd.f32 %v645, %v658
    %v664 = vadd.f32 %v646, %v658
    %v665 = vadd.f32 %v647, %v658
    %v666 = vadd.f32 %v648, %v658
    %v667 = vadd.f32 %v649, %v658
    %v668 = vadd.f32 %v650, %v658
    %v669 = vadd.f32 %v651, %v658
    %v670 = vadd.f32 %v652, %v658
    %v671 = vadd.f32 %v653, %v658
    %v672 = vadd.f32 %v654, %v658
    %v673 = vadd.f32 %v655, %v658
    %v674 = vadd.f32 %v656, %v658
    %v691 = vlaneseq
    %v692 = vand.u32 %v691, 127
    %v693 = vlaneseq
    %v694 = vshrl.u32 %v693, 7
    %v695 = vsub.s32 %v692, %v694
    %v696 = vrot.slane %v659, %v695
    %v697 = vadd.s32 %v692, 4294967288
    %v698 = vlaneseq
    %v699 = vshrl.u32 %v698, 7
    %v700 = vsub.s32 %v697, %v699
    %v701 = vrot.slane %v660, %v700
    %vm702 = vcmask 130112
    %v703 = vsel %vm702, %v701, %v696
    %v704 = vadd.s32 %v692, 4294967280
    %v705 = vlaneseq
    %v706 = vshrl.u32 %v705, 7
    %v707 = vsub.s32 %v704, %v706
    %v708 = vrot.slane %v661, %v707
    %vm709 = vcmask 195712
    %v710 = vsel %vm709, %v708, %v703
    %v711 = vadd.s32 %v692, 4294967272
    %v712 = vlaneseq
    %v713 = vshrl.u32 %v712, 7
    %v714 = vsub.s32 %v711, %v713
    %v715 = vrot.slane %v662, %v714
    %vm716 = vcmask 261312
    %v717 = vsel %vm716, %v715, %v710
    %v718 = vadd.s32 %v692, 4294967264
    %v719 = vlaneseq
    %v720 = vshrl.u32 %v719, 7
    %v721 = vsub.s32 %v718, %v720
    %v722 = vrot.slane %v663, %v721
    %vm723 = vcmask 326912
    %v724 = vsel %vm723, %v722, %v717
    %v725 = vadd.s32 %v692, 4294967256
    %v726 = vlaneseq
    %v727 = vshrl.u32 %v726, 7
    %v728 = vsub.s32 %v725, %v727
    %v729 = vrot.slane %v664, %v728
    %vm730 = vcmask 392512
    %v731 = vsel %vm730, %v729, %v724
    %v732 = vadd.s32 %v692, 4294967248
    %v733 = vlaneseq
    %v734 = vshrl.u32 %v733, 7
    %v735 = vsub.s32 %v732, %v734
    %v736 = vrot.slane %v665, %v735
    %vm737 = vcmask 458112
    %v738 = vsel %vm737, %v736, %v731
    %v739 = vadd.s32 %v692, 4294967240
    %v740 = vlaneseq
    %v741 = vshrl.u32 %v740, 7
    %v742 = vsub.s32 %v739, %v741
    %v743 = vrot.slane %v666, %v742
    %vm744 = vcmask 523712
    %v745 = vsel %vm744, %v743, %v738
    %v746 = vadd.s32 %v692, 4294967232
    %v747 = vlaneseq
    %v748 = vshrl.u32 %v747, 7
    %v749 = vsub.s32 %v746, %v748
    %v750 = vrot.slane %v667, %v749
    %vm751 = vcmask 589312
    %v752 = vsel %vm751, %v750, %v745
    %v753 = vadd.s32 %v692, 4294967224
    %v754 = vlaneseq
    %v755 = vshrl.u32 %v754, 7
    %v756 = vsub.s32 %v753, %v755
    %v757 = vrot.slane %v668, %v756
    %vm758 = vcmask 654912
    %v759 = vsel %vm758, %v757, %v752
    %v760 = vadd.s32 %v692, 4294967216
    %v761 = vlaneseq
    %v762 = vshrl.u32 %v761, 7
    %v763 = vsub.s32 %v760, %v762
    %v764 = vrot.slane %v669, %v763
    %vm765 = vcmask 720512
    %v766 = vsel %vm765, %v764, %v759
    %v767 = vadd.s32 %v692, 4294967208
    %v768 = vlaneseq
    %v769 = vshrl.u32 %v768, 7
    %v770 = vsub.s32 %v767, %v769
    %v771 = vrot.slane %v670, %v770
    %vm772 = vcmask 786112
    %v773 = vsel %vm772, %v771, %v766
    %v774 = vadd.s32 %v692, 4294967200
    %v775 = vlaneseq
    %v776 = vshrl.u32 %v775, 7
    %v777 = vsub.s32 %v774, %v776
    %v778 = vrot.slane %v671, %v777
    %vm779 = vcmask 851712
    %v780 = vsel %vm779, %v778, %v773
    %v781 = vadd.s32 %v692, 4294967192
    %v782 = vlaneseq
    %v783 = vshrl.u32 %v782, 7
    %v784 = vsub.s32 %v781, %v783
    %v785 = vrot.slane %v672, %v784
    %vm786 = vcmask 917312
    %v787 = vsel %vm786, %v785, %v780
    %v788 = vadd.s32 %v692, 4294967184
    %v789 = vlaneseq
    %v790 = vshrl.u32 %v789, 7
    %v791 = vsub.s32 %v788, %v790
    %v792 = vrot.slane %v673, %v791
    %vm793 = vcmask 982912
    %v794 = vsel %vm793, %v792, %v787
    %v795 = vadd.s32 %v692, 4294967176
    %v796 = vlaneseq
    %v797 = vshrl.u32 %v796, 7
    %v798 = vsub.s32 %v795, %v797
    %v799 = vrot.slane %v674, %v798
    %vm800 = vcmask 1048512
    %v801 = vsel %vm800, %v799, %v794
    %803 = vst [vmem:[#allocation5] sm:$0x1] %v801
    // Predicated region
    $region38: #{tpu_custom_call.1} parent=1 // pred_check
      _
    $region39: #{tpu_custom_call.1} parent=1 // pred_check_branch
      %805 = sbr.rel (0) target = $region41
    $region40: #{tpu_custom_call.1} parent=1 // pred_region
      %s807 = ssub.s32 16, 16
      %808 = vsyncadd [#allocation6], %s807
      %s810 = sshll.u32 [#allocation5], 4
      %s811 = int_to_ptr.vmem [resolvable:$true] %s810
      %813 = dma.vmem_to_hbm [thread:$0]  %s811, 16, %s9, [#allocation6]
    $region41: #{tpu_custom_call.1} parent=1 // pred_fallthru
      _
    // Predicated region
    $region42: #{tpu_custom_call.1} parent=1 // pred_check
      _
    $region43: #{tpu_custom_call.1} parent=1 // pred_check_branch
      %815 = sbr.rel (0) target = $region45
    $region44: #{tpu_custom_call.1} parent=1 // pred_region
      %816 = dma.done [#allocation6], 16
    $region45: #{tpu_custom_call.1} parent=1 // pred_fallthru
      _
    %817 = vsyncpa [#allocation6], 1

// kernel: tpu_custom_call.1
$region0: #{tpu_custom_call.1}
  #allocation0 [shape = 'u32[]', space=smem, size = 0x4, offset = 0x4, fixed_abs, tag = 'smem constant byte address 0x4 - core index']
  #allocation1 [shape = 'u32[144,128]{1,0:T(1,128)}', space=vmem, size = 0x12000, scoped, tag = 'internal scratch']
  #allocation2 [shape = 'f32[1]{0:T(128)S(6)}', space=smem, size = 0x200, scoped, tag = 'scoped memory for tpu_custom_call.1']
  #allocation3 [shape = 'f32[1]{0:T(128)S(6)}', space=smem, size = 0x200, scoped, tag = 'scoped memory for tpu_custom_call.1']
  #allocation4 [shape = 'f32[1]{0:T(128)S(6)}', space=smem, size = 0x200, scoped, tag = 'scoped memory for tpu_custom_call.1']
  %s0 = inlined_call_operand.vmem [shape: f32[128,2], index: 0, kind: input, shape index: {}]
  %s1 = inlined_call_operand.vmem [shape: f32[2,128], index: 1, kind: input, shape index: {}]
  %s2 = inlined_call_operand.vmem [shape: f32[1,128], index: 2, kind: input, shape index: {}]
  %s3 = inlined_call_operand.vmem [shape: bf16[128,128], index: 3, kind: input, shape index: {}]
  %s4 = inlined_call_operand.vmem [shape: f32[1,128], index: 4, kind: input, shape index: {}]
  %s5 = inlined_call_operand.vmem [shape: f32[1,128], index: 5, kind: input, shape index: {}]
  %s6 = inlined_call_operand.<no memory space> [shape: f32[1], index: 6, kind: input, shape index: {}]
  %s7 = inlined_call_operand.<no memory space> [shape: f32[1], index: 7, kind: input, shape index: {}]
  %s8 = inlined_call_operand.<no memory space> [shape: f32[1], index: 8, kind: input, shape index: {}]
  %s9 = inlined_call_operand.hbm [shape: f32[1,128], index: 9, kind: output, shape index: {}]
  %s10 = sld [smem:[#allocation0]]
  $region46: #{tpu_custom_call.1} parent=0
    _
  %s12 = ssub.s32 1, %s10
  %s13 = scalar_select 0, %s12, %s10
  %14 = sst [smem:[#allocation2]] %s6
  %15 = sst [smem:[#allocation3]] %s7
  %16 = sst [smem:[#allocation4]] %s8
  $region1: #{tpu_custom_call.1} parent=0
    #allocation5 [shape = 'u8[512]{0}', space=vmem, size = 0x400, scoped, tag = 'output window, operand 0, single buffered']
    #allocation6 [shape = 's32[1]{0}', space=sflag, size = 0x4, scoped, tag = 'scoped memory for tpu_custom_call.1']
    %17 = vsyncpa [#allocation6], 0
    // Predicated region
    $region2: #{tpu_custom_call.1} parent=1 // pred_check
      _
    $region3: #{tpu_custom_call.1} parent=1 // pred_check_branch
      %19 = sbr.rel (0) target = $region5
    $region4: #{tpu_custom_call.1} parent=1 // pred_region
      _
    $region5: #{tpu_custom_call.1} parent=1 // pred_fallthru
      _
    // Predicated region
    $region6: #{tpu_custom_call.1} parent=1 // pred_check
      _
    $region7: #{tpu_custom_call.1} parent=1 // pred_check_branch
      %21 = sbr.rel (0) target = $region9
    $region8: #{tpu_custom_call.1} parent=1 // pred_region
      _
    $region9: #{tpu_custom_call.1} parent=1 // pred_fallthru
      _
    // Predicated region
    $region10: #{tpu_custom_call.1} parent=1 // pred_check
      _
    $region11: #{tpu_custom_call.1} parent=1 // pred_check_branch
      %23 = sbr.rel (0) target = $region13
    $region12: #{tpu_custom_call.1} parent=1 // pred_region
      _
    $region13: #{tpu_custom_call.1} parent=1 // pred_fallthru
      _
    // Predicated region
    $region14: #{tpu_custom_call.1} parent=1 // pred_check
      _
    $region15: #{tpu_custom_call.1} parent=1 // pred_check_branch
      %25 = sbr.rel (0) target = $region17
    $region16: #{tpu_custom_call.1} parent=1 // pred_region
      _
    $region17: #{tpu_custom_call.1} parent=1 // pred_fallthru
      _
    // Predicated region
    $region18: #{tpu_custom_call.1} parent=1 // pred_check
      _
    $region19: #{tpu_custom_call.1} parent=1 // pred_check_branch
      %27 = sbr.rel (0) target = $region21
    $region20: #{tpu_custom_call.1} parent=1 // pred_region
      _
    $region21: #{tpu_custom_call.1} parent=1 // pred_fallthru
      _
    // Predicated region
    $region22: #{tpu_custom_call.1} parent=1 // pred_check
      _
    $region23: #{tpu_custom_call.1} parent=1 // pred_check_branch
      %29 = sbr.rel (0) target = $region25
    $region24: #{tpu_custom_call.1} parent=1 // pred_region
      _
    $region25: #{tpu_custom_call.1} parent=1 // pred_fallthru
      _
    // Predicated region
    $region26: #{tpu_custom_call.1} parent=1 // pred_check
      _
    $region27: #{tpu_custom_call.1} parent=1 // pred_check_branch
      %31 = sbr.rel (0) target = $region29
    $region28: #{tpu_custom_call.1} parent=1 // pred_region
      _
    $region29: #{tpu_custom_call.1} parent=1 // pred_fallthru
      _
    // Predicated region
    $region30: #{tpu_custom_call.1} parent=1 // pred_check
      _
    $region31: #{tpu_custom_call.1} parent=1 // pred_check_branch
      %33 = sbr.rel (0) target = $region33
    $region32: #{tpu_custom_call.1} parent=1 // pred_region
      _
    $region33: #{tpu_custom_call.1} parent=1 // pred_fallthru
      _
    // Predicated region
    $region34: #{tpu_custom_call.1} parent=1 // pred_check
      _
    $region35: #{tpu_custom_call.1} parent=1 // pred_check_branch
      %35 = sbr.rel (0) target = $region37
    $region36: #{tpu_custom_call.1} parent=1 // pred_region
      _
    $region37: #{tpu_custom_call.1} parent=1 // pred_fallthru
      _
    %v37 = vld [vmem:[%s0] sm:$0xff]
    %v38 = vld [vmem:[%s0 + $0x8] sm:$0xff]
    %v39 = vld [vmem:[%s0 + $0x10] sm:$0xff]
    %v40 = vld [vmem:[%s0 + $0x18] sm:$0xff]
    %v41 = vld [vmem:[%s0 + $0x20] sm:$0xff]
    %v42 = vld [vmem:[%s0 + $0x28] sm:$0xff]
    %v43 = vld [vmem:[%s0 + $0x30] sm:$0xff]
    %v44 = vld [vmem:[%s0 + $0x38] sm:$0xff]
    %v45 = vld [vmem:[%s0 + $0x40] sm:$0xff]
    %v46 = vld [vmem:[%s0 + $0x48] sm:$0xff]
    %v47 = vld [vmem:[%s0 + $0x50] sm:$0xff]
    %v48 = vld [vmem:[%s0 + $0x58] sm:$0xff]
    %v49 = vld [vmem:[%s0 + $0x60] sm:$0xff]
    %v50 = vld [vmem:[%s0 + $0x68] sm:$0xff]
    %v51 = vld [vmem:[%s0 + $0x70] sm:$0xff]
    %v52 = vld [vmem:[%s0 + $0x78] sm:$0xff]
    %v53 = vld [vmem:[%s1] sm:$0x1]
    %55 = vset.pattern.permute.xlu0 0
    %56 = vperm.xlu0 %55, %v37
    %v57 = vpop.permute.xlu0 %56
    %60 = vset.pattern.permute.xlu0 0
    %61 = vperm.xlu0 %60, %v38
    %v62 = vpop.permute.xlu0 %61
    %65 = vset.pattern.permute.xlu0 0
    %66 = vperm.xlu0 %65, %v39
    %v67 = vpop.permute.xlu0 %66
    %70 = vset.pattern.permute.xlu0 0
    %71 = vperm.xlu0 %70, %v40
    %v72 = vpop.permute.xlu0 %71
    %75 = vset.pattern.permute.xlu0 0
    %76 = vperm.xlu0 %75, %v41
    %v77 = vpop.permute.xlu0 %76
    %80 = vset.pattern.permute.xlu0 0
    %81 = vperm.xlu0 %80, %v42
    %v82 = vpop.permute.xlu0 %81
    %85 = vset.pattern.permute.xlu0 0
    %86 = vperm.xlu0 %85, %v43
    %v87 = vpop.permute.xlu0 %86
    %90 = vset.pattern.permute.xlu0 0
    %91 = vperm.xlu0 %90, %v44
    %v92 = vpop.permute.xlu0 %91
    %95 = vset.pattern.permute.xlu0 0
    %96 = vperm.xlu0 %95, %v45
    %v97 = vpop.permute.xlu0 %96
    %100 = vset.pattern.permute.xlu0 0
    %101 = vperm.xlu0 %100, %v46
    %v102 = vpop.permute.xlu0 %101
    %105 = vset.pattern.permute.xlu0 0
    %106 = vperm.xlu0 %105, %v47
    %v107 = vpop.permute.xlu0 %106
    %110 = vset.pattern.permute.xlu0 0
    %111 = vperm.xlu0 %110, %v48
    %v112 = vpop.permute.xlu0 %111
    %115 = vset.pattern.permute.xlu0 0
    %116 = vperm.xlu0 %115, %v49
    %v117 = vpop.permute.xlu0 %116
    %120 = vset.pattern.permute.xlu0 0
    %121 = vperm.xlu0 %120, %v50
    %v122 = vpop.permute.xlu0 %121
    %125 = vset.pattern.permute.xlu0 0
    %126 = vperm.xlu0 %125, %v51
    %v127 = vpop.permute.xlu0 %126
    %130 = vset.pattern.permute.xlu0 0
    %131 = vperm.xlu0 %130, %v52
    %v132 = vpop.permute.xlu0 %131
    %v134 = vlaneseq
    %v135 = vshrl.u32 %v134, 7
    %v136 = vsub.s32 0, %v135
    %v137 = vrot.slane %v53, %v136
    %v138 = vmul.f32 %v57, %v137
    %v139 = vmul.f32 %v62, %v137
    %v140 = vmul.f32 %v67, %v137
    %v141 = vmul.f32 %v72, %v137
    %v142 = vmul.f32 %v77, %v137
    %v143 = vmul.f32 %v82, %v137
    %v144 = vmul.f32 %v87, %v137
    %v145 = vmul.f32 %v92, %v137
    %v146 = vmul.f32 %v97, %v137
    %v147 = vmul.f32 %v102, %v137
    %v148 = vmul.f32 %v107, %v137
    %v149 = vmul.f32 %v112, %v137
    %v150 = vmul.f32 %v117, %v137
    %v151 = vmul.f32 %v122, %v137
    %v152 = vmul.f32 %v127, %v137
    %v153 = vmul.f32 %v132, %v137
    %v154 = vld [vmem:[%s1 + $0x1] sm:$0x1]
    %155 = vset.pattern.permute.xlu0 1
    %156 = vperm.xlu0 %155, %v37
    %v157 = vpop.permute.xlu0 %156
    %159 = vset.pattern.permute.xlu0 1
    %160 = vperm.xlu0 %159, %v38
    %v161 = vpop.permute.xlu0 %160
    %163 = vset.pattern.permute.xlu0 1
    %164 = vperm.xlu0 %163, %v39
    %v165 = vpop.permute.xlu0 %164
    %167 = vset.pattern.permute.xlu0 1
    %168 = vperm.xlu0 %167, %v40
    %v169 = vpop.permute.xlu0 %168
    %171 = vset.pattern.permute.xlu0 1
    %172 = vperm.xlu0 %171, %v41
    %v173 = vpop.permute.xlu0 %172
    %175 = vset.pattern.permute.xlu0 1
    %176 = vperm.xlu0 %175, %v42
    %v177 = vpop.permute.xlu0 %176
    %179 = vset.pattern.permute.xlu0 1
    %180 = vperm.xlu0 %179, %v43
    %v181 = vpop.permute.xlu0 %180
    %183 = vset.pattern.permute.xlu0 1
    %184 = vperm.xlu0 %183, %v44
    %v185 = vpop.permute.xlu0 %184
    %187 = vset.pattern.permute.xlu0 1
    %188 = vperm.xlu0 %187, %v45
    %v189 = vpop.permute.xlu0 %188
    %191 = vset.pattern.permute.xlu0 1
    %192 = vperm.xlu0 %191, %v46
    %v193 = vpop.permute.xlu0 %192
    %195 = vset.pattern.permute.xlu0 1
    %196 = vperm.xlu0 %195, %v47
    %v197 = vpop.permute.xlu0 %196
    %199 = vset.pattern.permute.xlu0 1
    %200 = vperm.xlu0 %199, %v48
    %v201 = vpop.permute.xlu0 %200
    %203 = vset.pattern.permute.xlu0 1
    %204 = vperm.xlu0 %203, %v49
    %v205 = vpop.permute.xlu0 %204
    %207 = vset.pattern.permute.xlu0 1
    %208 = vperm.xlu0 %207, %v50
    %v209 = vpop.permute.xlu0 %208
    %211 = vset.pattern.permute.xlu0 1
    %212 = vperm.xlu0 %211, %v51
    %v213 = vpop.permute.xlu0 %212
    %215 = vset.pattern.permute.xlu0 1
    %216 = vperm.xlu0 %215, %v52
    %v217 = vpop.permute.xlu0 %216
    %v219 = vlaneseq
    %v220 = vshrl.u32 %v219, 7
    %v221 = vsub.s32 0, %v220
    %v222 = vrot.slane %v154, %v221
    %v223 = vmul.f32 %v157, %v222
    %v224 = vmul.f32 %v161, %v222
    %v225 = vmul.f32 %v165, %v222
    %v226 = vmul.f32 %v169, %v222
    %v227 = vmul.f32 %v173, %v222
    %v228 = vmul.f32 %v177, %v222
    %v229 = vmul.f32 %v181, %v222
    %v230 = vmul.f32 %v185, %v222
    %v231 = vmul.f32 %v189, %v222
    %v232 = vmul.f32 %v193, %v222
    %v233 = vmul.f32 %v197, %v222
    %v234 = vmul.f32 %v201, %v222
    %v235 = vmul.f32 %v205, %v222
    %v236 = vmul.f32 %v209, %v222
    %v237 = vmul.f32 %v213, %v222
    %v238 = vmul.f32 %v217, %v222
    %v239 = vadd.f32 %v138, %v223
    %v240 = vadd.f32 %v139, %v224
    %v241 = vadd.f32 %v140, %v225
    %v242 = vadd.f32 %v141, %v226
    %v243 = vadd.f32 %v142, %v227
    %v244 = vadd.f32 %v143, %v228
    %v245 = vadd.f32 %v144, %v229
    %v246 = vadd.f32 %v145, %v230
    %v247 = vadd.f32 %v146, %v231
    %v248 = vadd.f32 %v147, %v232
    %v249 = vadd.f32 %v148, %v233
    %v250 = vadd.f32 %v149, %v234
    %v251 = vadd.f32 %v150, %v235
    %v252 = vadd.f32 %v151, %v236
    %v253 = vadd.f32 %v152, %v237
    %v254 = vadd.f32 %v153, %v238
    %v255 = vld [vmem:[%s2] sm:$0x1]
    %v257 = vlaneseq
    %v258 = vshrl.u32 %v257, 7
    %v259 = vsub.s32 0, %v258
    %v260 = vrot.slane %v255, %v259
    %v262 = vadd.f32 %v239, %v260
    %v263 = vadd.f32 %v240, %v260
    %v264 = vadd.f32 %v241, %v260
    %v265 = vadd.f32 %v242, %v260
    %v266 = vadd.f32 %v243, %v260
    %v267 = vadd.f32 %v244, %v260
    %v268 = vadd.f32 %v245, %v260
    %v269 = vadd.f32 %v246, %v260
    %v270 = vadd.f32 %v247, %v260
    %v271 = vadd.f32 %v248, %v260
    %v272 = vadd.f32 %v249, %v260
    %v273 = vadd.f32 %v250, %v260
    %v274 = vadd.f32 %v251, %v260
    %v275 = vadd.f32 %v252, %v260
    %v276 = vadd.f32 %v253, %v260
    %v277 = vadd.f32 %v254, %v260
    %v278 = vmax.f32 %v262, 0.0
    %v279 = vmax.f32 %v263, 0.0
    %v280 = vmax.f32 %v264, 0.0
    %v281 = vmax.f32 %v265, 0.0
    %v282 = vmax.f32 %v266, 0.0
    %v283 = vmax.f32 %v267, 0.0
    %v284 = vmax.f32 %v268, 0.0
    %v285 = vmax.f32 %v269, 0.0
    %v286 = vmax.f32 %v270, 0.0
    %v287 = vmax.f32 %v271, 0.0
    %v288 = vmax.f32 %v272, 0.0
    %v289 = vmax.f32 %v273, 0.0
    %v290 = vmax.f32 %v274, 0.0
    %v291 = vmax.f32 %v275, 0.0
    %v292 = vmax.f32 %v276, 0.0
    %v293 = vmax.f32 %v277, 0.0
    %v294 = vpack.c.bf16 %v279, %v278
    %v295 = vpack.c.bf16 %v281, %v280
    %v296 = vpack.c.bf16 %v283, %v282
    %v297 = vpack.c.bf16 %v285, %v284
    %v298 = vpack.c.bf16 %v287, %v286
    %v299 = vpack.c.bf16 %v289, %v288
    %v300 = vpack.c.bf16 %v291, %v290
    %v301 = vpack.c.bf16 %v293, %v292
    %v302 = vld [vmem:[%s3] sm:$0xf]
    %v303 = vld [vmem:[%s3 + $0x4] sm:$0xf]
    %v304 = vld [vmem:[%s3 + $0x8] sm:$0xf]
    %v305 = vld [vmem:[%s3 + $0xc] sm:$0xf]
    %v306 = vld [vmem:[%s3 + $0x10] sm:$0xf]
    %v307 = vld [vmem:[%s3 + $0x14] sm:$0xf]
    %v308 = vld [vmem:[%s3 + $0x18] sm:$0xf]
    %v309 = vld [vmem:[%s3 + $0x1c] sm:$0xf]
    %v310 = vld [vmem:[%s3 + $0x20] sm:$0xf]
    %v311 = vld [vmem:[%s3 + $0x24] sm:$0xf]
    %v312 = vld [vmem:[%s3 + $0x28] sm:$0xf]
    %v313 = vld [vmem:[%s3 + $0x2c] sm:$0xf]
    %v314 = vld [vmem:[%s3 + $0x30] sm:$0xf]
    %v315 = vld [vmem:[%s3 + $0x34] sm:$0xf]
    %v316 = vld [vmem:[%s3 + $0x38] sm:$0xf]
    %v317 = vld [vmem:[%s3 + $0x3c] sm:$0xf]
    %v318 = vld [vmem:[%s4] sm:$0x1]
    %v320 = vlaneseq
    %v321 = vshrl.u32 %v320, 7
    %v322 = vsub.s32 0, %v321
    %v323 = vrot.slane %v318, %v322
    %v341 = vunpack.c.l.b16 %v302
    %v342 = vunpack.c.l.b16 %v303
    %v343 = vunpack.c.l.b16 %v304
    %v344 = vunpack.c.l.b16 %v305
    %v345 = vunpack.c.l.b16 %v306
    %v346 = vunpack.c.l.b16 %v307
    %v347 = vunpack.c.l.b16 %v308
    %v348 = vunpack.c.l.b16 %v309
    %v349 = vunpack.c.l.b16 %v310
    %v350 = vunpack.c.l.b16 %v311
    %v351 = vunpack.c.l.b16 %v312
    %v352 = vunpack.c.l.b16 %v313
    %v353 = vunpack.c.l.b16 %v314
    %v354 = vunpack.c.l.b16 %v315
    %v355 = vunpack.c.l.b16 %v316
    %v356 = vunpack.c.l.b16 %v317
    %v357 = vpack.c.b16 %v342, %v341
    %v358 = vpack.c.b16 %v344, %v343
    %v359 = vpack.c.b16 %v346, %v345
    %v360 = vpack.c.b16 %v348, %v347
    %v361 = vpack.c.b16 %v350, %v349
    %v362 = vpack.c.b16 %v352, %v351
    %v363 = vpack.c.b16 %v354, %v353
    %v364 = vpack.c.b16 %v356, %v355
    %373 = vmatprep.subr.bf16.mxu0 0
    %374 = vmatpush1.bf16.msra.mxu0 %v364
    %375 = vmatprep.subr.bf16.mxu0 0
    %376 = vmatpush1.bf16.msra.mxu0 %v363
    %377 = vmatprep.subr.bf16.mxu0 0
    %378 = vmatpush1.bf16.msra.mxu0 %v362
    %379 = vmatprep.subr.bf16.mxu0 0
    %380 = vmatpush1.bf16.msra.mxu0 %v361
    %381 = vmatprep.subr.bf16.mxu0 0
    %382 = vmatpush1.bf16.msra.mxu0 %v360
    %383 = vmatprep.subr.bf16.mxu0 0
    %384 = vmatpush1.bf16.msra.mxu0 %v359
    %385 = vmatprep.subr.bf16.mxu0 0
    %386 = vmatpush1.bf16.msra.mxu0 %v358
    %387 = vmatprep.subr.bf16.mxu0 0
    %388 = vmatpush1.bf16.msra.mxu0 %v357
    %389 = vmatprep.subr.bf16.mxu0 0
    %390 = vmatpush2.bf16.msra.mxu0 0
    %391 = vmatprep.subr.bf16.mxu0 0
    %392 = vmatpush2.bf16.msra.mxu0 0
    %393 = vmatprep.subr.bf16.mxu0 0
    %394 = vmatpush2.bf16.msra.mxu0 0
    %395 = vmatprep.subr.bf16.mxu0 0
    %396 = vmatpush2.bf16.msra.mxu0 0
    %397 = vmatprep.subr.bf16.mxu0 0
    %398 = vmatpush2.bf16.msra.mxu0 0
    %399 = vmatprep.subr.bf16.mxu0 0
    %400 = vmatpush2.bf16.msra.mxu0 0
    %401 = vmatprep.subr.bf16.mxu0 0
    %402 = vmatpush2.bf16.msra.mxu0 0
    %403 = vmatprep.subr.bf16.mxu0 0
    %404 = vmatpush2.bf16.msra.mxu0 0
    %405 = vmatprep.mubr.bf16.mxu0 0
    %406 = vmatmul.mubr.bf16.gmra.mxu0 %v294
    %v407 = vpop.f32.mrf.mxu0
    %v408 = vadd.f32 %v323, %v407
    %v409 = vpop.f32.mrf.mxu0
    %v410 = vpop.f32.mrf.mxu0
    %v411 = vadd.f32 %v323, %v410
    %v412 = vpop.f32.mrf.mxu0
    %413 = vmatprep.mubr.bf16.mxu0 0
    %414 = vmatmul.mubr.bf16.gmra.mxu0 %v295
    %v415 = vpop.f32.mrf.mxu0
    %v416 = vadd.f32 %v323, %v415
    %v417 = vpop.f32.mrf.mxu0
    %v418 = vpop.f32.mrf.mxu0
    %v419 = vadd.f32 %v323, %v418
    %v420 = vpop.f32.mrf.mxu0
    %421 = vmatprep.mubr.bf16.mxu0 0
    %422 = vmatmul.mubr.bf16.gmra.mxu0 %v296
    %v423 = vpop.f32.mrf.mxu0
    %v424 = vadd.f32 %v323, %v423
    %v425 = vpop.f32.mrf.mxu0
    %v426 = vpop.f32.mrf.mxu0
    %v427 = vadd.f32 %v323, %v426
    %v428 = vpop.f32.mrf.mxu0
    %429 = vmatprep.mubr.bf16.mxu0 0
    %430 = vmatmul.mubr.bf16.gmra.mxu0 %v297
    %v431 = vpop.f32.mrf.mxu0
    %v432 = vadd.f32 %v323, %v431
    %v433 = vpop.f32.mrf.mxu0
    %v434 = vpop.f32.mrf.mxu0
    %v435 = vadd.f32 %v323, %v434
    %v436 = vpop.f32.mrf.mxu0
    %437 = vmatprep.mubr.bf16.mxu0 0
    %438 = vmatmul.mubr.bf16.gmra.mxu0 %v298
    %v439 = vpop.f32.mrf.mxu0
    %v440 = vadd.f32 %v323, %v439
    %v441 = vpop.f32.mrf.mxu0
    %v442 = vpop.f32.mrf.mxu0
    %v443 = vadd.f32 %v323, %v442
    %v444 = vpop.f32.mrf.mxu0
    %445 = vmatprep.mubr.bf16.mxu0 0
    %446 = vmatmul.mubr.bf16.gmra.mxu0 %v299
    %v447 = vpop.f32.mrf.mxu0
    %v448 = vadd.f32 %v323, %v447
    %v449 = vpop.f32.mrf.mxu0
    %v450 = vpop.f32.mrf.mxu0
    %v451 = vadd.f32 %v323, %v450
    %v452 = vpop.f32.mrf.mxu0
    %453 = vmatprep.mubr.bf16.mxu0 0
    %454 = vmatmul.mubr.bf16.gmra.mxu0 %v300
    %v455 = vpop.f32.mrf.mxu0
    %v456 = vadd.f32 %v323, %v455
    %v457 = vpop.f32.mrf.mxu0
    %v458 = vpop.f32.mrf.mxu0
    %v459 = vadd.f32 %v323, %v458
    %v460 = vpop.f32.mrf.mxu0
    %461 = vmatprep.mubr.bf16.mxu0 0
    %462 = vmatmul.mubr.bf16.gmra.mxu0 %v301
    %v463 = vpop.f32.mrf.mxu0
    %v464 = vadd.f32 %v323, %v463
    %v465 = vpop.f32.mrf.mxu0
    %v466 = vpop.f32.mrf.mxu0
    %v467 = vadd.f32 %v323, %v466
    %v468 = vpop.f32.mrf.mxu0
    %469 = vdwg.mxu0
    %v470 = vmax.f32 %v408, 0.0
    %v471 = vmax.f32 %v411, 0.0
    %v472 = vmax.f32 %v416, 0.0
    %v473 = vmax.f32 %v419, 0.0
    %v474 = vmax.f32 %v424, 0.0
    %v475 = vmax.f32 %v427, 0.0
    %v476 = vmax.f32 %v432, 0.0
    %v477 = vmax.f32 %v435, 0.0
    %v478 = vmax.f32 %v440, 0.0
    %v479 = vmax.f32 %v443, 0.0
    %v480 = vmax.f32 %v448, 0.0
    %v481 = vmax.f32 %v451, 0.0
    %v482 = vmax.f32 %v456, 0.0
    %v483 = vmax.f32 %v459, 0.0
    %v484 = vmax.f32 %v464, 0.0
    %v485 = vmax.f32 %v467, 0.0
    %v486 = vld [vmem:[%s5] sm:$0x1]
    %v488 = vlaneseq
    %v489 = vshrl.u32 %v488, 7
    %v490 = vsub.s32 0, %v489
    %v491 = vrot.slane %v486, %v490
    %v493 = vmul.f32 %v470, %v491
    %v494 = vmul.f32 %v471, %v491
    %v495 = vmul.f32 %v472, %v491
    %v496 = vmul.f32 %v473, %v491
    %v497 = vmul.f32 %v474, %v491
    %v498 = vmul.f32 %v475, %v491
    %v499 = vmul.f32 %v476, %v491
    %v500 = vmul.f32 %v477, %v491
    %v501 = vmul.f32 %v478, %v491
    %v502 = vmul.f32 %v479, %v491
    %v503 = vmul.f32 %v480, %v491
    %v504 = vmul.f32 %v481, %v491
    %v505 = vmul.f32 %v482, %v491
    %v506 = vmul.f32 %v483, %v491
    %v507 = vmul.f32 %v484, %v491
    %v508 = vmul.f32 %v485, %v491
    %509 = vadd.xlane.f32.xlu0 %v493
    %v510 = vpop.xlane.xlu0 %509
    %511 = vadd.xlane.f32.xlu0 %v494
    %v512 = vpop.xlane.xlu0 %511
    %513 = vadd.xlane.f32.xlu0 %v495
    %v514 = vpop.xlane.xlu0 %513
    %515 = vadd.xlane.f32.xlu0 %v496
    %v516 = vpop.xlane.xlu0 %515
    %517 = vadd.xlane.f32.xlu0 %v497
    %v518 = vpop.xlane.xlu0 %517
    %519 = vadd.xlane.f32.xlu0 %v498
    %v520 = vpop.xlane.xlu0 %519
    %521 = vadd.xlane.f32.xlu0 %v499
    %v522 = vpop.xlane.xlu0 %521
    %523 = vadd.xlane.f32.xlu0 %v500
    %v524 = vpop.xlane.xlu0 %523
    %525 = vadd.xlane.f32.xlu0 %v501
    %v526 = vpop.xlane.xlu0 %525
    %527 = vadd.xlane.f32.xlu0 %v502
    %v528 = vpop.xlane.xlu0 %527
    %529 = vadd.xlane.f32.xlu0 %v503
    %v530 = vpop.xlane.xlu0 %529
    %531 = vadd.xlane.f32.xlu0 %v504
    %v532 = vpop.xlane.xlu0 %531
    %533 = vadd.xlane.f32.xlu0 %v505
    %v534 = vpop.xlane.xlu0 %533
    %535 = vadd.xlane.f32.xlu0 %v506
    %v536 = vpop.xlane.xlu0 %535
    %537 = vadd.xlane.f32.xlu0 %v507
    %v538 = vpop.xlane.xlu0 %537
    %539 = vadd.xlane.f32.xlu0 %v508
    %v540 = vpop.xlane.xlu0 %539
    %s541 = sld [smem:[#allocation2]]
    %v542 = vstv %s541
    %v543 = vadd.f32 %v510, %v542
    %v544 = vadd.f32 %v512, %v542
    %v545 = vadd.f32 %v514, %v542
    %v546 = vadd.f32 %v516, %v542
    %v547 = vadd.f32 %v518, %v542
    %v548 = vadd.f32 %v520, %v542
    %v549 = vadd.f32 %v522, %v542
    %v550 = vadd.f32 %v524, %v542
    %v551 = vadd.f32 %v526, %v542
    %v552 = vadd.f32 %v528, %v542
    %v553 = vadd.f32 %v530, %v542
    %v554 = vadd.f32 %v532, %v542
    %v555 = vadd.f32 %v534, %v542
    %v556 = vadd.f32 %v536, %v542
    %v557 = vadd.f32 %v538, %v542
    %v558 = vadd.f32 %v540, %v542
    %v559 = vsub.f32 %v543, %v543
    %v560 = vsub.f32 %v544, %v544
    %v561 = vsub.f32 %v545, %v545
    %v562 = vsub.f32 %v546, %v546
    %v563 = vsub.f32 %v547, %v547
    %v564 = vsub.f32 %v548, %v548
    %v565 = vsub.f32 %v549, %v549
    %v566 = vsub.f32 %v550, %v550
    %v567 = vsub.f32 %v551, %v551
    %v568 = vsub.f32 %v552, %v552
    %v569 = vsub.f32 %v553, %v553
    %v570 = vsub.f32 %v554, %v554
    %v571 = vsub.f32 %v555, %v555
    %v572 = vsub.f32 %v556, %v556
    %v573 = vsub.f32 %v557, %v557
    %v574 = vsub.f32 %v558, %v558
    %v575 = vmul.f32 %v559, %v559
    %v576 = vmul.f32 %v560, %v560
    %v577 = vmul.f32 %v561, %v561
    %v578 = vmul.f32 %v562, %v562
    %v579 = vmul.f32 %v563, %v563
    %v580 = vmul.f32 %v564, %v564
    %v581 = vmul.f32 %v565, %v565
    %v582 = vmul.f32 %v566, %v566
    %v583 = vmul.f32 %v567, %v567
    %v584 = vmul.f32 %v568, %v568
    %v585 = vmul.f32 %v569, %v569
    %v586 = vmul.f32 %v570, %v570
    %v587 = vmul.f32 %v571, %v571
    %v588 = vmul.f32 %v572, %v572
    %v589 = vmul.f32 %v573, %v573
    %v590 = vmul.f32 %v574, %v574
    %v591 = vadd.f32 %v575, 1e-06
    %v592 = vadd.f32 %v576, 1e-06
    %v593 = vadd.f32 %v577, 1e-06
    %v594 = vadd.f32 %v578, 1e-06
    %v595 = vadd.f32 %v579, 1e-06
    %v596 = vadd.f32 %v580, 1e-06
    %v597 = vadd.f32 %v581, 1e-06
    %v598 = vadd.f32 %v582, 1e-06
    %v599 = vadd.f32 %v583, 1e-06
    %v600 = vadd.f32 %v584, 1e-06
    %v601 = vadd.f32 %v585, 1e-06
    %v602 = vadd.f32 %v586, 1e-06
    %v603 = vadd.f32 %v587, 1e-06
    %v604 = vadd.f32 %v588, 1e-06
    %v605 = vadd.f32 %v589, 1e-06
    %v606 = vadd.f32 %v590, 1e-06
    %v607 = vrsqrt.pop %v591
    %v608 = vrsqrt.pop %v592
    %v609 = vrsqrt.pop %v593
    %v610 = vrsqrt.pop %v594
    %v611 = vrsqrt.pop %v595
    %v612 = vrsqrt.pop %v596
    %v613 = vrsqrt.pop %v597
    %v614 = vrsqrt.pop %v598
    %v615 = vrsqrt.pop %v599
    %v616 = vrsqrt.pop %v600
    %v617 = vrsqrt.pop %v601
    %v618 = vrsqrt.pop %v602
    %v619 = vrsqrt.pop %v603
    %v620 = vrsqrt.pop %v604
    %v621 = vrsqrt.pop %v605
    %v622 = vrsqrt.pop %v606
    %v623 = vmul.f32 %v559, %v607
    %v624 = vmul.f32 %v560, %v608
    %v625 = vmul.f32 %v561, %v609
    %v626 = vmul.f32 %v562, %v610
    %v627 = vmul.f32 %v563, %v611
    %v628 = vmul.f32 %v564, %v612
    %v629 = vmul.f32 %v565, %v613
    %v630 = vmul.f32 %v566, %v614
    %v631 = vmul.f32 %v567, %v615
    %v632 = vmul.f32 %v568, %v616
    %v633 = vmul.f32 %v569, %v617
    %v634 = vmul.f32 %v570, %v618
    %v635 = vmul.f32 %v571, %v619
    %v636 = vmul.f32 %v572, %v620
    %v637 = vmul.f32 %v573, %v621
    %v638 = vmul.f32 %v574, %v622
    %s639 = sld [smem:[#allocation3]]
    %v640 = vstv %s639
    %v641 = vmul.f32 %v640, %v623
    %v642 = vmul.f32 %v640, %v624
    %v643 = vmul.f32 %v640, %v625
    %v644 = vmul.f32 %v640, %v626
    %v645 = vmul.f32 %v640, %v627
    %v646 = vmul.f32 %v640, %v628
    %v647 = vmul.f32 %v640, %v629
    %v648 = vmul.f32 %v640, %v630
    %v649 = vmul.f32 %v640, %v631
    %v650 = vmul.f32 %v640, %v632
    %v651 = vmul.f32 %v640, %v633
    %v652 = vmul.f32 %v640, %v634
    %v653 = vmul.f32 %v640, %v635
    %v654 = vmul.f32 %v640, %v636
    %v655 = vmul.f32 %v640, %v637
    %v656 = vmul.f32 %v640, %v638
    %s657 = sld [smem:[#allocation4]]
    %v658 = vstv %s657
    %v659 = vadd.f32 %v641, %v658
    %v660 = vadd.f32 %v642, %v658
    %v661 = vadd.f32 %v643, %v658
    %v662 = vadd.f32 %v644, %v658
    %v663 = vadd.f32 %v645, %v658
    %v664 = vadd.f32 %v646, %v658
    %v665 = vadd.f32 %v647, %v658
    %v666 = vadd.f32 %v648, %v658
    %v667 = vadd.f32 %v649, %v658
    %v668 = vadd.f32 %v650, %v658
    %v669 = vadd.f32 %v651, %v658
    %v670 = vadd.f32 %v652, %v658
    %v671 = vadd.f32 %v653, %v658
    %v672 = vadd.f32 %v654, %v658
    %v673 = vadd.f32 %v655, %v658
    %v674 = vadd.f32 %v656, %v658
    %v691 = vlaneseq
    %v692 = vand.u32 %v691, 127
    %v693 = vlaneseq
    %v694 = vshrl.u32 %v693, 7
    %v695 = vsub.s32 %v692, %v694
    %v696 = vrot.slane %v659, %v695
    %v697 = vadd.s32 %v692, 4294967288
    %v698 = vlaneseq
    %v699 = vshrl.u32 %v698, 7
    %v700 = vsub.s32 %v697, %v699
    %v701 = vrot.slane %v660, %v700
    %vm702 = vcmask 130112
    %v703 = vsel %vm702, %v701, %v696
    %v704 = vadd.s32 %v692, 4294967280
    %v705 = vlaneseq
    %v706 = vshrl.u32 %v705, 7
    %v707 = vsub.s32 %v704, %v706
    %v708 = vrot.slane %v661, %v707
    %vm709 = vcmask 195712
    %v710 = vsel %vm709, %v708, %v703
    %v711 = vadd.s32 %v692, 4294967272
    %v712 = vlaneseq
    %v713 = vshrl.u32 %v712, 7
    %v714 = vsub.s32 %v711, %v713
    %v715 = vrot.slane %v662, %v714
    %vm716 = vcmask 261312
    %v717 = vsel %vm716, %v715, %v710
    %v718 = vadd.s32 %v692, 4294967264
    %v719 = vlaneseq
    %v720 = vshrl.u32 %v719, 7
    %v721 = vsub.s32 %v718, %v720
    %v722 = vrot.slane %v663, %v721
    %vm723 = vcmask 326912
    %v724 = vsel %vm723, %v722, %v717
    %v725 = vadd.s32 %v692, 4294967256
    %v726 = vlaneseq
    %v727 = vshrl.u32 %v726, 7
    %v728 = vsub.s32 %v725, %v727
    %v729 = vrot.slane %v664, %v728
    %vm730 = vcmask 392512
    %v731 = vsel %vm730, %v729, %v724
    %v732 = vadd.s32 %v692, 4294967248
    %v733 = vlaneseq
    %v734 = vshrl.u32 %v733, 7
    %v735 = vsub.s32 %v732, %v734
    %v736 = vrot.slane %v665, %v735
    %vm737 = vcmask 458112
    %v738 = vsel %vm737, %v736, %v731
    %v739 = vadd.s32 %v692, 4294967240
    %v740 = vlaneseq
    %v741 = vshrl.u32 %v740, 7
    %v742 = vsub.s32 %v739, %v741
    %v743 = vrot.slane %v666, %v742
    %vm744 = vcmask 523712
    %v745 = vsel %vm744, %v743, %v738
    %v746 = vadd.s32 %v692, 4294967232
    %v747 = vlaneseq
    %v748 = vshrl.u32 %v747, 7
    %v749 = vsub.s32 %v746, %v748
    %v750 = vrot.slane %v667, %v749
    %vm751 = vcmask 589312
    %v752 = vsel %vm751, %v750, %v745
    %v753 = vadd.s32 %v692, 4294967224
    %v754 = vlaneseq
    %v755 = vshrl.u32 %v754, 7
    %v756 = vsub.s32 %v753, %v755
    %v757 = vrot.slane %v668, %v756
    %vm758 = vcmask 654912
    %v759 = vsel %vm758, %v757, %v752
    %v760 = vadd.s32 %v692, 4294967216
    %v761 = vlaneseq
    %v762 = vshrl.u32 %v761, 7
    %v763 = vsub.s32 %v760, %v762
    %v764 = vrot.slane %v669, %v763
    %vm765 = vcmask 720512
    %v766 = vsel %vm765, %v764, %v759
    %v767 = vadd.s32 %v692, 4294967208
    %v768 = vlaneseq
    %v769 = vshrl.u32 %v768, 7
    %v770 = vsub.s32 %v767, %v769
    %v771 = vrot.slane %v670, %v770
    %vm772 = vcmask 786112
    %v773 = vsel %vm772, %v771, %v766
    %v774 = vadd.s32 %v692, 4294967200
    %v775 = vlaneseq
    %v776 = vshrl.u32 %v775, 7
    %v777 = vsub.s32 %v774, %v776
    %v778 = vrot.slane %v671, %v777
    %vm779 = vcmask 851712
    %v780 = vsel %vm779, %v778, %v773
    %v781 = vadd.s32 %v692, 4294967192
    %v782 = vlaneseq
    %v783 = vshrl.u32 %v782, 7
    %v784 = vsub.s32 %v781, %v783
    %v785 = vrot.slane %v672, %v784
    %vm786 = vcmask 917312
    %v787 = vsel %vm786, %v785, %v780
    %v788 = vadd.s32 %v692, 4294967184
    %v789 = vlaneseq
    %v790 = vshrl.u32 %v789, 7
    %v791 = vsub.s32 %v788, %v790
    %v792 = vrot.slane %v673, %v791
    %vm793 = vcmask 982912
    %v794 = vsel %vm793, %v792, %v787
    %v795 = vadd.s32 %v692, 4294967176
    %v796 = vlaneseq
    %v797 = vshrl.u32 %v796, 7
    %v798 = vsub.s32 %v795, %v797
    %v799 = vrot.slane %v674, %v798
    %vm800 = vcmask 1048512
    %v801 = vsel %vm800, %v799, %v794
    %803 = vst [vmem:[#allocation5] sm:$0x1] %v801
    // Predicated region
    $region38: #{tpu_custom_call.1} parent=1 // pred_check
      _
    $region39: #{tpu_custom_call.1} parent=1 // pred_check_branch
      %805 = sbr.rel (0) target = $region41
    $region40: #{tpu_custom_call.1} parent=1 // pred_region
      %s807 = ssub.s32 16, 16
      %808 = vsyncadd [#allocation6], %s807
      %s810 = sshll.u32 [#allocation5], 4
      %s811 = int_to_ptr.vmem [resolvable:$true] %s810
      %813 = dma.vmem_to_hbm [thread:$0]  %s811, 16, %s9, [#allocation6]
    $region41: #{tpu_custom_call.1} parent=1 // pred_fallthru
      _
    // Predicated region
    $region42: #{tpu_custom_call.1} parent=1 // pred_check
      _
    $region43: #{tpu_custom_call.1} parent=1 // pred_check_branch
      %815 = sbr.rel (0) target = $region45
    $region44: #{tpu_custom_call.1} parent=1 // pred_region
      %816 = dma.done [#allocation6], 16
    $region45: #{tpu_custom_call.1} parent=1 // pred_fallthru
      _
    %817 = vsyncpa [#allocation6], 1

</llo_original>
